<compile_context>
chip_gen: v7x
topology: tpu7x:2x2x1
jax: 0.10.0
libtpu: 0.0.40
codegen_flags: <defaults>
</compile_context>

<pallas_src>
import functools

import jax
import jax.numpy as jnp
from jax import lax
from jax.experimental import pallas as pl
from jax.experimental.pallas import tpu as pltpu


# ----------------------------------------------------------------------------
# Pallas kernel
# ----------------------------------------------------------------------------
def dact_kernel(
    x_ref,                                    # (L, S, Bp, K) whole sequence
    wih0_ref, whh0_ref, bi0_ref, bh0_ref,     # GRU layer 0 (fused gates)
    wih1_ref, whh1_ref, bi1_ref, bh1_ref,     # GRU layer 1 (fused gates)
    whead_ref, bhead_ref,                     # fused head: (H, C+1), (1, C+1)
    out_ref,                                  # (L, Bp, C+1) packed [y_accum | p]
    *, n_band, n_class, hidden_size, seq_len,
):
    H = hidden_size
    C = n_class
    Bp = out_ref.shape[1]

    # Load all weights once (they stay resident in vregs/VMEM across the loop).
    Wih0 = wih0_ref[...]; Whh0 = whh0_ref[...]
    Bi0 = bi0_ref[...];   Bh0 = bh0_ref[...]
    Wih1 = wih1_ref[...]; Whh1 = whh1_ref[...]
    Bi1 = bi1_ref[...];   Bh1 = bh1_ref[...]
    Whead = whead_ref[...]; Bhead = bhead_ref[...]

    def gru(x, h, Wih, Whh, Bi, Bh):
        # Fused gate matmuls: (B, in) @ (in, 3H) and (B, H) @ (H, 3H).
        # Gate order along the 3H axis is PyTorch's [r, z, n].
        gx = jnp.dot(x, Wih, preferred_element_type=jnp.float32) + Bi
        gh = jnp.dot(h, Whh, preferred_element_type=jnp.float32) + Bh
        r = jax.nn.sigmoid(gx[:, :H] + gh[:, :H])
        z = jax.nn.sigmoid(gx[:, H:2 * H] + gh[:, H:2 * H])
        n = jnp.tanh(gx[:, 2 * H:] + r * gh[:, 2 * H:])
        return (1.0 - z) * n + z * h

    def cell_step(x, h0, h1):
        h0n = gru(x, h0, Wih0, Whh0, Bi0, Bh0)
        h1n = gru(h0n, h1, Wih1, Whh1, Bi1, Bh1)
        # Fused halting + class head: one (B, H) @ (H, C+1) matmul.
        head = jnp.dot(h1n, Whead, preferred_element_type=jnp.float32) + Bhead
        h_step = jax.nn.sigmoid(head[:, C:C + 1])
        logits = head[:, :C]
        m = jnp.max(logits, axis=-1, keepdims=True)
        e = jnp.exp(logits - m)
        y_step = e * pl.reciprocal(jnp.sum(e, axis=-1, keepdims=True),
                                   approx=False)
        return h0n, h1n, h_step, y_step

    def time_body(t, carry):
        hc0, hc1 = carry
        x_t = x_ref[t]                         # (S, Bp, K), dynamic time index

        # --- DACT step 0 -----------------------------------------------------
        h0, h1, h_step, y_step = cell_step(x_t[0], hc0, hc1)
        y_accum, p_step = y_step, h_step
        s0, s1 = h0, h1

        # --- DACT steps 1 .. n_band-1 (static, fully unrolled) ---------------
        for s in range(1, n_band):
            h0, h1, h_step, y_step = cell_step(x_t[s], h0, h1)
            y_accum = y_step * p_step + y_accum * (1.0 - p_step)
            p_step = p_step * h_step
            s0 = h0 * p_step + s0 * (1.0 - p_step)
            s1 = h1 * p_step + s1 * (1.0 - p_step)

        # p_accum in the reference is re-zeroed each step -> equals final p_step.
        out_ref[t] = jnp.concatenate([y_accum, p_step], axis=-1)
        # Hidden carried to the next timestep is s_accum.
        return (s0, s1)

    h_zero = jnp.zeros((Bp, H), jnp.float32)   # hidden=None -> zeros at t=0
    lax.fori_loop(0, seq_len, time_body, (h_zero, h_zero))


# ----------------------------------------------------------------------------
# Wrapper: parameter packing, batch padding, pallas_call, output unpacking
# ----------------------------------------------------------------------------
def _pack_gru(wih, whh, bih, bhh):
    """PyTorch GRUCell params -> fused (in,3H)/(H,3H) weights + folded biases."""
    H = whh.shape[1]
    Wih = wih.T                                    # (in, 3H), [r,z,n] blocks
    Whh = whh.T                                    # (H, 3H)
    zeros_h = jnp.zeros((H,), bih.dtype)
    # r/z biases folded together; b_hn kept on the hidden path (multiplied by r)
    bi = bih + jnp.concatenate([bhh[:2 * H], zeros_h])
    bh = jnp.concatenate([jnp.zeros((2 * H,), bhh.dtype), bhh[2 * H:]])
    return Wih, Whh, bi.reshape(1, 3 * H), bh.reshape(1, 3 * H)


def dact_block_forward(inp, params, *, block_size, n_class, hidden_size):
    """inp: (B, F, L) float32, subband_type='contiguous'. Returns (out, p_cost)."""
    B, F, L = inp.shape
    K = block_size
    S = F // K
    H = hidden_size
    C = n_class

    Bp = ((B + 7) // 8) * 8                        # pad batch to f32 sublane

    # (B, F, L) -> (B, S, K, L) -> (L, S, B, K) -> pad batch
    x = inp.reshape(B, S, K, L).transpose(3, 1, 0, 2)
    if Bp != B:
        x = jnp.pad(x, ((0, 0), (0, 0), (0, Bp - B), (0, 0)))

    Wih0, Whh0, Bi0, Bh0 = _pack_gru(params['wih0'], params['whh0'],
                                     params['bih0'], params['bhh0'])
    Wih1, Whh1, Bi1, Bh1 = _pack_gru(params['wih1'], params['whh1'],
                                     params['bih1'], params['bhh1'])
    Whead = jnp.concatenate([params['wo'].T, params['wh'].T], axis=1)  # (H, C+1)
    bhead = jnp.concatenate([params['bo'], params['bh']]).reshape(1, C + 1)

    def full(shape):
        nd = len(shape)
        return pl.BlockSpec(shape, lambda i, _nd=nd: (0,) * _nd)

    in_specs = [
        full((L, S, Bp, K)),
        full(Wih0.shape), full(Whh0.shape), full(Bi0.shape), full(Bh0.shape),
        full(Wih1.shape), full(Whh1.shape), full(Bi1.shape), full(Bh1.shape),
        full(Whead.shape), full(bhead.shape),
    ]
    out_specs = full((L, Bp, C + 1))
    out_shape = jax.ShapeDtypeStruct((L, Bp, C + 1), jnp.float32)

    kernel = functools.partial(dact_kernel, n_band=S, n_class=C,
                               hidden_size=H, seq_len=L)
    packed = pl.pallas_call(
        kernel,
        out_shape=out_shape,
        grid_spec=pltpu.PrefetchScalarGridSpec(
            num_scalar_prefetch=0,
            grid=(1,),                             # whole sequence per call
            in_specs=in_specs,
            out_specs=out_specs,
        ),
        compiler_params=pltpu.CompilerParams(
            dimension_semantics=("arbitrary",)),
    )(x, Wih0, Whh0, Bi0, Bh0, Wih1, Whh1, Bi1, Bh1, Whead, bhead)

    out = packed[:, :B, :C].transpose(1, 0, 2)     # (B, L, C)
    p_cost = packed[:, :B, C:].transpose(1, 0, 2)  # (B, L, 1)
    return out, p_cost


# ----------------------------------------------------------------------------
# Pure-JAX reference (mirrors the PyTorch training-mode forward)
# ----------------------------------------------------------------------------
def dact_block_ref(inp, params, *, block_size, n_class, hidden_size):
    B, F, L = inp.shape
    K = block_size
    S = F // K
    H = hidden_size
    x = inp.reshape(B, S, K, L)

    def gru(x_, h_, wih, whh, bih, bhh):
        gx = x_ @ wih.T + bih
        gh = h_ @ whh.T + bhh
        r = jax.nn.sigmoid(gx[:, :H] + gh[:, :H])
        z = jax.nn.sigmoid(gx[:, H:2 * H] + gh[:, H:2 * H])
        n = jnp.tanh(gx[:, 2 * H:] + r * gh[:, 2 * H:])
        return (1 - z) * n + z * h_

    h0 = jnp.zeros((B, H), jnp.float32)
    h1 = jnp.zeros((B, H), jnp.float32)
    outs, pcs = [], []
    for t in range(L):
        hh0, hh1 = h0, h1
        for step in range(S):
            xi = x[:, step, :, t]
            hh0 = gru(xi, hh0, params['wih0'], params['whh0'],
                      params['bih0'], params['bhh0'])
            hh1 = gru(hh0, hh1, params['wih1'], params['whh1'],
                      params['bih1'], params['bhh1'])
            h_step = jax.nn.sigmoid(hh1 @ params['wh'].T + params['bh'])
            y_step = jax.nn.softmax(hh1 @ params['wo'].T + params['bo'], axis=-1)
            if step == 0:
                y_accum, p_step = y_step, h_step
                s0, s1 = hh0, hh1
            else:
                y_accum = y_step * p_step + y_accum * (1 - p_step)
                p_step = p_step * h_step
                s0 = hh0 * p_step + s0 * (1 - p_step)
                s1 = hh1 * p_step + s1 * (1 - p_step)
        outs.append(y_accum)
        pcs.append(p_step)
        h0, h1 = s0, s1
    return jnp.stack(outs, axis=1), jnp.stack(pcs, axis=1)


# ----------------------------------------------------------------------------
if __name__ == "__main__":
    B = 2
    block_size = 8     # K == cell input_size
    n_band = 4         # S
    seq_len = 8        # L
    H = 32
    C = 5
    F = block_size * n_band

    key = jax.random.PRNGKey(0)
    keys = jax.random.split(key, 16)
    scale = 1.0 / jnp.sqrt(H)

    def u(k, shape):
        return jax.random.uniform(k, shape, jnp.float32, -scale, scale)

    params = {
        'wih0': u(keys[0], (3 * H, block_size)),
        'whh0': u(keys[1], (3 * H, H)),
        'bih0': u(keys[2], (3 * H,)),
        'bhh0': u(keys[3], (3 * H,)),
        'wih1': u(keys[4], (3 * H, H)),
        'whh1': u(keys[5], (3 * H, H)),
        'bih1': u(keys[6], (3 * H,)),
        'bhh1': u(keys[7], (3 * H,)),
        'wh':   u(keys[8], (1, H)),
        'bh':   u(keys[9], (1,)),
        'wo':   u(keys[10], (C, H)),
        'bo':   u(keys[11], (C,)),
    }
    inp = jax.random.normal(keys[12], (B, F, seq_len), jnp.float32)

    out, p_cost = dact_block_forward(
        inp, params, block_size=block_size, n_class=C, hidden_size=H)
    out, p_cost = jax.block_until_ready((out, p_cost))

    ref_out, ref_pc = dact_block_ref(
        inp, params, block_size=block_size, n_class=C, hidden_size=H)

    assert out.shape == (B, seq_len, C), out.shape
    assert p_cost.shape == (B, seq_len, 1), p_cost.shape
    assert jnp.allclose(out, ref_out, atol=2e-4, rtol=1e-3), \
        float(jnp.max(jnp.abs(out - ref_out)))
    assert jnp.allclose(p_cost, ref_pc, atol=2e-4, rtol=1e-3), \
        float(jnp.max(jnp.abs(p_cost - ref_pc)))

    print("KERNEL_OK")
</pallas_src>

<mosaic_0001>
module attributes {stable_mosaic.version = 11 : i64} {
  func.func @dact_kernel(%arg0: i32, %arg1: memref<8x4x8x8xf32, #tpu.memory_space<vmem>>, %arg2: memref<8x96xf32, #tpu.memory_space<vmem>>, %arg3: memref<32x96xf32, #tpu.memory_space<vmem>>, %arg4: memref<1x96xf32, #tpu.memory_space<vmem>>, %arg5: memref<1x96xf32, #tpu.memory_space<vmem>>, %arg6: memref<32x96xf32, #tpu.memory_space<vmem>>, %arg7: memref<32x96xf32, #tpu.memory_space<vmem>>, %arg8: memref<1x96xf32, #tpu.memory_space<vmem>>, %arg9: memref<1x96xf32, #tpu.memory_space<vmem>>, %arg10: memref<32x6xf32, #tpu.memory_space<vmem>>, %arg11: memref<1x6xf32, #tpu.memory_space<vmem>>, %arg12: memref<8x8x6xf32, #tpu.memory_space<vmem>>) attributes {dimension_semantics = [#tpu.dimension_semantics<arbitrary>], iteration_bounds = array<i64: 1>, scalar_prefetch = 0 : i64, scratch_operands = 0 : i64, tpu.core_type = #tpu.core_type<tc>, window_params = [{pipeline_mode = #tpu.pipeline_mode<synchronous>, transform_indices = @transform_0, window_bounds = array<i64: 8, 4, 8, 8>}, {pipeline_mode = #tpu.pipeline_mode<synchronous>, transform_indices = @transform_1, window_bounds = array<i64: 8, 96>}, {pipeline_mode = #tpu.pipeline_mode<synchronous>, transform_indices = @transform_2, window_bounds = array<i64: 32, 96>}, {pipeline_mode = #tpu.pipeline_mode<synchronous>, transform_indices = @transform_3, window_bounds = array<i64: 1, 96>}, {pipeline_mode = #tpu.pipeline_mode<synchronous>, transform_indices = @transform_4, window_bounds = array<i64: 1, 96>}, {pipeline_mode = #tpu.pipeline_mode<synchronous>, transform_indices = @transform_5, window_bounds = array<i64: 32, 96>}, {pipeline_mode = #tpu.pipeline_mode<synchronous>, transform_indices = @transform_6, window_bounds = array<i64: 32, 96>}, {pipeline_mode = #tpu.pipeline_mode<synchronous>, transform_indices = @transform_7, window_bounds = array<i64: 1, 96>}, {pipeline_mode = #tpu.pipeline_mode<synchronous>, transform_indices = @transform_8, window_bounds = array<i64: 1, 96>}, {pipeline_mode = #tpu.pipeline_mode<synchronous>, transform_indices = @transform_9, window_bounds = array<i64: 32, 6>}, {pipeline_mode = #tpu.pipeline_mode<synchronous>, transform_indices = @transform_10, window_bounds = array<i64: 1, 6>}, {pipeline_mode = #tpu.pipeline_mode<synchronous>, transform_indices = @transform_11, window_bounds = array<i64: 8, 8, 6>}]} {
    %c0 = arith.constant 0 : index
    %c0_0 = arith.constant 0 : index
    %0 = vector.load %arg2[%c0, %c0_0] : memref<8x96xf32, #tpu.memory_space<vmem>>, vector<8x96xf32>
    %c0_1 = arith.constant 0 : index
    %c0_2 = arith.constant 0 : index
    %1 = vector.load %arg3[%c0_1, %c0_2] : memref<32x96xf32, #tpu.memory_space<vmem>>, vector<32x96xf32>
    %c0_3 = arith.constant 0 : index
    %c0_4 = arith.constant 0 : index
    %2 = vector.load %arg4[%c0_3, %c0_4] : memref<1x96xf32, #tpu.memory_space<vmem>>, vector<1x96xf32>
    %c0_5 = arith.constant 0 : index
    %c0_6 = arith.constant 0 : index
    %3 = vector.load %arg5[%c0_5, %c0_6] : memref<1x96xf32, #tpu.memory_space<vmem>>, vector<1x96xf32>
    %c0_7 = arith.constant 0 : index
    %c0_8 = arith.constant 0 : index
    %4 = vector.load %arg6[%c0_7, %c0_8] : memref<32x96xf32, #tpu.memory_space<vmem>>, vector<32x96xf32>
    %c0_9 = arith.constant 0 : index
    %c0_10 = arith.constant 0 : index
    %5 = vector.load %arg7[%c0_9, %c0_10] : memref<32x96xf32, #tpu.memory_space<vmem>>, vector<32x96xf32>
    %c0_11 = arith.constant 0 : index
    %c0_12 = arith.constant 0 : index
    %6 = vector.load %arg8[%c0_11, %c0_12] : memref<1x96xf32, #tpu.memory_space<vmem>>, vector<1x96xf32>
    %c0_13 = arith.constant 0 : index
    %c0_14 = arith.constant 0 : index
    %7 = vector.load %arg9[%c0_13, %c0_14] : memref<1x96xf32, #tpu.memory_space<vmem>>, vector<1x96xf32>
    %c0_15 = arith.constant 0 : index
    %c0_16 = arith.constant 0 : index
    %8 = vector.load %arg10[%c0_15, %c0_16] : memref<32x6xf32, #tpu.memory_space<vmem>>, vector<32x6xf32>
    %c0_17 = arith.constant 0 : index
    %c0_18 = arith.constant 0 : index
    %9 = vector.load %arg11[%c0_17, %c0_18] : memref<1x6xf32, #tpu.memory_space<vmem>>, vector<1x6xf32>
    %cst = arith.constant 0.000000e+00 : f32
    %10 = vector.broadcast %cst : f32 to vector<8x32xf32>
    %c0_i32 = arith.constant 0 : i32
    %c8_i32 = arith.constant 8 : i32
    %11 = arith.addi %c0_i32, %c8_i32 : i32
    %c1_i32 = arith.constant 1 : i32
    %12:2 = scf.for %arg13 = %c0_i32 to %11 step %c1_i32 iter_args(%arg14 = %10, %arg15 = %10) -> (vector<8x32xf32>, vector<8x32xf32>)  : i32 {
      %13 = arith.index_cast %arg13 : i32 to index
      %c0_20 = arith.constant 0 : index
      %c0_21 = arith.constant 0 : index
      %c0_22 = arith.constant 0 : index
      %14 = vector.load %arg1[%13, %c0_20, %c0_21, %c0_22] : memref<8x4x8x8xf32, #tpu.memory_space<vmem>>, vector<1x4x8x8xf32>
      %15 = vector.shape_cast %14 : vector<1x4x8x8xf32> to vector<4x8x8xf32>
      %16 = vector.extract_strided_slice %15 {offsets = [0, 0, 0], sizes = [1, 8, 8], strides = [1, 1, 1]} : vector<4x8x8xf32> to vector<1x8x8xf32>
      %17 = vector.shape_cast %16 : vector<1x8x8xf32> to vector<8x8xf32>
      %cst_23 = arith.constant dense<0.000000e+00> : vector<8x96xf32>
      %18 = tpu.matmul %17, %0, %cst_23 {dimension_numbers = #tpu.dot_dimension_numbers<[1], [0], [0], [1], [0, 0, 1, 1], [], []>} : vector<8x8xf32>, vector<8x96xf32>, vector<8x96xf32> -> vector<8x96xf32>
      %19 = vector.broadcast %2 : vector<1x96xf32> to vector<8x96xf32>
      %20 = arith.addf %18, %19 : vector<8x96xf32>
      %cst_24 = arith.constant dense<0.000000e+00> : vector<8x96xf32>
      %21 = tpu.matmul %arg14, %1, %cst_24 {dimension_numbers = #tpu.dot_dimension_numbers<[1], [0], [0], [1], [0, 0, 1, 1], [], []>} : vector<8x32xf32>, vector<32x96xf32>, vector<8x96xf32> -> vector<8x96xf32>
      %22 = vector.broadcast %3 : vector<1x96xf32> to vector<8x96xf32>
      %23 = arith.addf %21, %22 : vector<8x96xf32>
      %24 = vector.extract_strided_slice %20 {offsets = [0, 0], sizes = [8, 32], strides = [1, 1]} : vector<8x96xf32> to vector<8x32xf32>
      %25 = vector.extract_strided_slice %23 {offsets = [0, 0], sizes = [8, 32], strides = [1, 1]} : vector<8x96xf32> to vector<8x32xf32>
      %26 = arith.addf %24, %25 : vector<8x32xf32>
      %27 = arith.negf %26 : vector<8x32xf32>
      %28 = math.exp %27 : vector<8x32xf32>
      %cst_25 = arith.constant 1.000000e+00 : f32
      %29 = vector.broadcast %cst_25 : f32 to vector<8x32xf32>
      %30 = arith.addf %29, %28 : vector<8x32xf32>
      %31 = arith.divf %29, %30 : vector<8x32xf32>
      %32 = vector.extract_strided_slice %20 {offsets = [0, 32], sizes = [8, 32], strides = [1, 1]} : vector<8x96xf32> to vector<8x32xf32>
      %33 = vector.extract_strided_slice %23 {offsets = [0, 32], sizes = [8, 32], strides = [1, 1]} : vector<8x96xf32> to vector<8x32xf32>
      %34 = arith.addf %32, %33 : vector<8x32xf32>
      %35 = arith.negf %34 : vector<8x32xf32>
      %36 = math.exp %35 : vector<8x32xf32>
      %cst_26 = arith.constant 1.000000e+00 : f32
      %37 = vector.broadcast %cst_26 : f32 to vector<8x32xf32>
      %38 = arith.addf %37, %36 : vector<8x32xf32>
      %39 = arith.divf %37, %38 : vector<8x32xf32>
      %40 = vector.extract_strided_slice %20 {offsets = [0, 64], sizes = [8, 32], strides = [1, 1]} : vector<8x96xf32> to vector<8x32xf32>
      %41 = vector.extract_strided_slice %23 {offsets = [0, 64], sizes = [8, 32], strides = [1, 1]} : vector<8x96xf32> to vector<8x32xf32>
      %42 = arith.mulf %31, %41 : vector<8x32xf32>
      %43 = arith.addf %40, %42 : vector<8x32xf32>
      %44 = math.tanh %43 : vector<8x32xf32>
      %cst_27 = arith.constant 1.000000e+00 : f32
      %45 = vector.broadcast %cst_27 : f32 to vector<8x32xf32>
      %46 = arith.subf %45, %39 : vector<8x32xf32>
      %47 = arith.mulf %46, %44 : vector<8x32xf32>
      %48 = arith.mulf %39, %arg14 : vector<8x32xf32>
      %49 = arith.addf %47, %48 : vector<8x32xf32>
      %cst_28 = arith.constant dense<0.000000e+00> : vector<8x96xf32>
      %50 = tpu.matmul %49, %4, %cst_28 {dimension_numbers = #tpu.dot_dimension_numbers<[1], [0], [0], [1], [0, 0, 1, 1], [], []>} : vector<8x32xf32>, vector<32x96xf32>, vector<8x96xf32> -> vector<8x96xf32>
      %51 = vector.broadcast %6 : vector<1x96xf32> to vector<8x96xf32>
      %52 = arith.addf %50, %51 : vector<8x96xf32>
      %cst_29 = arith.constant dense<0.000000e+00> : vector<8x96xf32>
      %53 = tpu.matmul %arg15, %5, %cst_29 {dimension_numbers = #tpu.dot_dimension_numbers<[1], [0], [0], [1], [0, 0, 1, 1], [], []>} : vector<8x32xf32>, vector<32x96xf32>, vector<8x96xf32> -> vector<8x96xf32>
      %54 = vector.broadcast %7 : vector<1x96xf32> to vector<8x96xf32>
      %55 = arith.addf %53, %54 : vector<8x96xf32>
      %56 = vector.extract_strided_slice %52 {offsets = [0, 0], sizes = [8, 32], strides = [1, 1]} : vector<8x96xf32> to vector<8x32xf32>
      %57 = vector.extract_strided_slice %55 {offsets = [0, 0], sizes = [8, 32], strides = [1, 1]} : vector<8x96xf32> to vector<8x32xf32>
      %58 = arith.addf %56, %57 : vector<8x32xf32>
      %59 = arith.negf %58 : vector<8x32xf32>
      %60 = math.exp %59 : vector<8x32xf32>
      %cst_30 = arith.constant 1.000000e+00 : f32
      %61 = vector.broadcast %cst_30 : f32 to vector<8x32xf32>
      %62 = arith.addf %61, %60 : vector<8x32xf32>
      %63 = arith.divf %61, %62 : vector<8x32xf32>
      %64 = vector.extract_strided_slice %52 {offsets = [0, 32], sizes = [8, 32], strides = [1, 1]} : vector<8x96xf32> to vector<8x32xf32>
      %65 = vector.extract_strided_slice %55 {offsets = [0, 32], sizes = [8, 32], strides = [1, 1]} : vector<8x96xf32> to vector<8x32xf32>
      %66 = arith.addf %64, %65 : vector<8x32xf32>
      %67 = arith.negf %66 : vector<8x32xf32>
      %68 = math.exp %67 : vector<8x32xf32>
      %cst_31 = arith.constant 1.000000e+00 : f32
      %69 = vector.broadcast %cst_31 : f32 to vector<8x32xf32>
      %70 = arith.addf %69, %68 : vector<8x32xf32>
      %71 = arith.divf %69, %70 : vector<8x32xf32>
      %72 = vector.extract_strided_slice %52 {offsets = [0, 64], sizes = [8, 32], strides = [1, 1]} : vector<8x96xf32> to vector<8x32xf32>
      %73 = vector.extract_strided_slice %55 {offsets = [0, 64], sizes = [8, 32], strides = [1, 1]} : vector<8x96xf32> to vector<8x32xf32>
      %74 = arith.mulf %63, %73 : vector<8x32xf32>
      %75 = arith.addf %72, %74 : vector<8x32xf32>
      %76 = math.tanh %75 : vector<8x32xf32>
      %cst_32 = arith.constant 1.000000e+00 : f32
      %77 = vector.broadcast %cst_32 : f32 to vector<8x32xf32>
      %78 = arith.subf %77, %71 : vector<8x32xf32>
      %79 = arith.mulf %78, %76 : vector<8x32xf32>
      %80 = arith.mulf %71, %arg15 : vector<8x32xf32>
      %81 = arith.addf %79, %80 : vector<8x32xf32>
      %cst_33 = arith.constant dense<0.000000e+00> : vector<8x6xf32>
      %82 = tpu.matmul %81, %8, %cst_33 {dimension_numbers = #tpu.dot_dimension_numbers<[1], [0], [0], [1], [0, 0, 1, 1], [], []>} : vector<8x32xf32>, vector<32x6xf32>, vector<8x6xf32> -> vector<8x6xf32>
      %83 = vector.broadcast %9 : vector<1x6xf32> to vector<8x6xf32>
      %84 = arith.addf %82, %83 : vector<8x6xf32>
      %85 = vector.extract_strided_slice %84 {offsets = [0, 5], sizes = [8, 1], strides = [1, 1]} : vector<8x6xf32> to vector<8x1xf32>
      %86 = arith.negf %85 : vector<8x1xf32>
      %87 = math.exp %86 : vector<8x1xf32>
      %cst_34 = arith.constant 1.000000e+00 : f32
      %88 = vector.broadcast %cst_34 : f32 to vector<8x1xf32>
      %89 = arith.addf %88, %87 : vector<8x1xf32>
      %90 = arith.divf %88, %89 : vector<8x1xf32>
      %91 = vector.extract_strided_slice %84 {offsets = [0, 0], sizes = [8, 5], strides = [1, 1]} : vector<8x6xf32> to vector<8x5xf32>
      %cst_35 = arith.constant dense<0xFF800000> : vector<8xf32>
      %92 = vector.multi_reduction <maximumf>, %91, %cst_35 [1] : vector<8x5xf32> to vector<8xf32>
      %93 = vector.shape_cast %92 : vector<8xf32> to vector<8x1xf32>
      %94 = vector.broadcast %93 : vector<8x1xf32> to vector<8x5xf32>
      %95 = arith.subf %91, %94 : vector<8x5xf32>
      %96 = math.exp %95 : vector<8x5xf32>
      %cst_36 = arith.constant dense<0.000000e+00> : vector<8xf32>
      %97 = vector.multi_reduction <add>, %96, %cst_36 [1] : vector<8x5xf32> to vector<8xf32>
      %98 = vector.shape_cast %97 : vector<8xf32> to vector<8x1xf32>
      %99 = tpu.reciprocal %98 : vector<8x1xf32> -> vector<8x1xf32>
      %100 = vector.broadcast %99 : vector<8x1xf32> to vector<8x5xf32>
      %101 = arith.mulf %96, %100 : vector<8x5xf32>
      %102 = vector.extract_strided_slice %15 {offsets = [1, 0, 0], sizes = [1, 8, 8], strides = [1, 1, 1]} : vector<4x8x8xf32> to vector<1x8x8xf32>
      %103 = vector.shape_cast %102 : vector<1x8x8xf32> to vector<8x8xf32>
      %cst_37 = arith.constant dense<0.000000e+00> : vector<8x96xf32>
      %104 = tpu.matmul %103, %0, %cst_37 {dimension_numbers = #tpu.dot_dimension_numbers<[1], [0], [0], [1], [0, 0, 1, 1], [], []>} : vector<8x8xf32>, vector<8x96xf32>, vector<8x96xf32> -> vector<8x96xf32>
      %105 = vector.broadcast %2 : vector<1x96xf32> to vector<8x96xf32>
      %106 = arith.addf %104, %105 : vector<8x96xf32>
      %cst_38 = arith.constant dense<0.000000e+00> : vector<8x96xf32>
      %107 = tpu.matmul %49, %1, %cst_38 {dimension_numbers = #tpu.dot_dimension_numbers<[1], [0], [0], [1], [0, 0, 1, 1], [], []>} : vector<8x32xf32>, vector<32x96xf32>, vector<8x96xf32> -> vector<8x96xf32>
      %108 = vector.broadcast %3 : vector<1x96xf32> to vector<8x96xf32>
      %109 = arith.addf %107, %108 : vector<8x96xf32>
      %110 = vector.extract_strided_slice %106 {offsets = [0, 0], sizes = [8, 32], strides = [1, 1]} : vector<8x96xf32> to vector<8x32xf32>
      %111 = vector.extract_strided_slice %109 {offsets = [0, 0], sizes = [8, 32], strides = [1, 1]} : vector<8x96xf32> to vector<8x32xf32>
      %112 = arith.addf %110, %111 : vector<8x32xf32>
      %113 = arith.negf %112 : vector<8x32xf32>
      %114 = math.exp %113 : vector<8x32xf32>
      %cst_39 = arith.constant 1.000000e+00 : f32
      %115 = vector.broadcast %cst_39 : f32 to vector<8x32xf32>
      %116 = arith.addf %115, %114 : vector<8x32xf32>
      %117 = arith.divf %115, %116 : vector<8x32xf32>
      %118 = vector.extract_strided_slice %106 {offsets = [0, 32], sizes = [8, 32], strides = [1, 1]} : vector<8x96xf32> to vector<8x32xf32>
      %119 = vector.extract_strided_slice %109 {offsets = [0, 32], sizes = [8, 32], strides = [1, 1]} : vector<8x96xf32> to vector<8x32xf32>
      %120 = arith.addf %118, %119 : vector<8x32xf32>
      %121 = arith.negf %120 : vector<8x32xf32>
      %122 = math.exp %121 : vector<8x32xf32>
      %cst_40 = arith.constant 1.000000e+00 : f32
      %123 = vector.broadcast %cst_40 : f32 to vector<8x32xf32>
      %124 = arith.addf %123, %122 : vector<8x32xf32>
      %125 = arith.divf %123, %124 : vector<8x32xf32>
      %126 = vector.extract_strided_slice %106 {offsets = [0, 64], sizes = [8, 32], strides = [1, 1]} : vector<8x96xf32> to vector<8x32xf32>
      %127 = vector.extract_strided_slice %109 {offsets = [0, 64], sizes = [8, 32], strides = [1, 1]} : vector<8x96xf32> to vector<8x32xf32>
      %128 = arith.mulf %117, %127 : vector<8x32xf32>
      %129 = arith.addf %126, %128 : vector<8x32xf32>
      %130 = math.tanh %129 : vector<8x32xf32>
      %cst_41 = arith.constant 1.000000e+00 : f32
      %131 = vector.broadcast %cst_41 : f32 to vector<8x32xf32>
      %132 = arith.subf %131, %125 : vector<8x32xf32>
      %133 = arith.mulf %132, %130 : vector<8x32xf32>
      %134 = arith.mulf %125, %49 : vector<8x32xf32>
      %135 = arith.addf %133, %134 : vector<8x32xf32>
      %cst_42 = arith.constant dense<0.000000e+00> : vector<8x96xf32>
      %136 = tpu.matmul %135, %4, %cst_42 {dimension_numbers = #tpu.dot_dimension_numbers<[1], [0], [0], [1], [0, 0, 1, 1], [], []>} : vector<8x32xf32>, vector<32x96xf32>, vector<8x96xf32> -> vector<8x96xf32>
      %137 = vector.broadcast %6 : vector<1x96xf32> to vector<8x96xf32>
      %138 = arith.addf %136, %137 : vector<8x96xf32>
      %cst_43 = arith.constant dense<0.000000e+00> : vector<8x96xf32>
      %139 = tpu.matmul %81, %5, %cst_43 {dimension_numbers = #tpu.dot_dimension_numbers<[1], [0], [0], [1], [0, 0, 1, 1], [], []>} : vector<8x32xf32>, vector<32x96xf32>, vector<8x96xf32> -> vector<8x96xf32>
      %140 = vector.broadcast %7 : vector<1x96xf32> to vector<8x96xf32>
      %141 = arith.addf %139, %140 : vector<8x96xf32>
      %142 = vector.extract_strided_slice %138 {offsets = [0, 0], sizes = [8, 32], strides = [1, 1]} : vector<8x96xf32> to vector<8x32xf32>
      %143 = vector.extract_strided_slice %141 {offsets = [0, 0], sizes = [8, 32], strides = [1, 1]} : vector<8x96xf32> to vector<8x32xf32>
      %144 = arith.addf %142, %143 : vector<8x32xf32>
      %145 = arith.negf %144 : vector<8x32xf32>
      %146 = math.exp %145 : vector<8x32xf32>
      %cst_44 = arith.constant 1.000000e+00 : f32
      %147 = vector.broadcast %cst_44 : f32 to vector<8x32xf32>
      %148 = arith.addf %147, %146 : vector<8x32xf32>
      %149 = arith.divf %147, %148 : vector<8x32xf32>
      %150 = vector.extract_strided_slice %138 {offsets = [0, 32], sizes = [8, 32], strides = [1, 1]} : vector<8x96xf32> to vector<8x32xf32>
      %151 = vector.extract_strided_slice %141 {offsets = [0, 32], sizes = [8, 32], strides = [1, 1]} : vector<8x96xf32> to vector<8x32xf32>
      %152 = arith.addf %150, %151 : vector<8x32xf32>
      %153 = arith.negf %152 : vector<8x32xf32>
      %154 = math.exp %153 : vector<8x32xf32>
      %cst_45 = arith.constant 1.000000e+00 : f32
      %155 = vector.broadcast %cst_45 : f32 to vector<8x32xf32>
      %156 = arith.addf %155, %154 : vector<8x32xf32>
      %157 = arith.divf %155, %156 : vector<8x32xf32>
      %158 = vector.extract_strided_slice %138 {offsets = [0, 64], sizes = [8, 32], strides = [1, 1]} : vector<8x96xf32> to vector<8x32xf32>
      %159 = vector.extract_strided_slice %141 {offsets = [0, 64], sizes = [8, 32], strides = [1, 1]} : vector<8x96xf32> to vector<8x32xf32>
      %160 = arith.mulf %149, %159 : vector<8x32xf32>
      %161 = arith.addf %158, %160 : vector<8x32xf32>
      %162 = math.tanh %161 : vector<8x32xf32>
      %cst_46 = arith.constant 1.000000e+00 : f32
      %163 = vector.broadcast %cst_46 : f32 to vector<8x32xf32>
      %164 = arith.subf %163, %157 : vector<8x32xf32>
      %165 = arith.mulf %164, %162 : vector<8x32xf32>
      %166 = arith.mulf %157, %81 : vector<8x32xf32>
      %167 = arith.addf %165, %166 : vector<8x32xf32>
      %cst_47 = arith.constant dense<0.000000e+00> : vector<8x6xf32>
      %168 = tpu.matmul %167, %8, %cst_47 {dimension_numbers = #tpu.dot_dimension_numbers<[1], [0], [0], [1], [0, 0, 1, 1], [], []>} : vector<8x32xf32>, vector<32x6xf32>, vector<8x6xf32> -> vector<8x6xf32>
      %169 = vector.broadcast %9 : vector<1x6xf32> to vector<8x6xf32>
      %170 = arith.addf %168, %169 : vector<8x6xf32>
      %171 = vector.extract_strided_slice %170 {offsets = [0, 5], sizes = [8, 1], strides = [1, 1]} : vector<8x6xf32> to vector<8x1xf32>
      %172 = arith.negf %171 : vector<8x1xf32>
      %173 = math.exp %172 : vector<8x1xf32>
      %cst_48 = arith.constant 1.000000e+00 : f32
      %174 = vector.broadcast %cst_48 : f32 to vector<8x1xf32>
      %175 = arith.addf %174, %173 : vector<8x1xf32>
      %176 = arith.divf %174, %175 : vector<8x1xf32>
      %177 = vector.extract_strided_slice %170 {offsets = [0, 0], sizes = [8, 5], strides = [1, 1]} : vector<8x6xf32> to vector<8x5xf32>
      %cst_49 = arith.constant dense<0xFF800000> : vector<8xf32>
      %178 = vector.multi_reduction <maximumf>, %177, %cst_49 [1] : vector<8x5xf32> to vector<8xf32>
      %179 = vector.shape_cast %178 : vector<8xf32> to vector<8x1xf32>
      %180 = vector.broadcast %179 : vector<8x1xf32> to vector<8x5xf32>
      %181 = arith.subf %177, %180 : vector<8x5xf32>
      %182 = math.exp %181 : vector<8x5xf32>
      %cst_50 = arith.constant dense<0.000000e+00> : vector<8xf32>
      %183 = vector.multi_reduction <add>, %182, %cst_50 [1] : vector<8x5xf32> to vector<8xf32>
      %184 = vector.shape_cast %183 : vector<8xf32> to vector<8x1xf32>
      %185 = tpu.reciprocal %184 : vector<8x1xf32> -> vector<8x1xf32>
      %186 = vector.broadcast %185 : vector<8x1xf32> to vector<8x5xf32>
      %187 = arith.mulf %182, %186 : vector<8x5xf32>
      %188 = vector.broadcast %90 : vector<8x1xf32> to vector<8x5xf32>
      %189 = arith.mulf %187, %188 : vector<8x5xf32>
      %cst_51 = arith.constant 1.000000e+00 : f32
      %190 = vector.broadcast %cst_51 : f32 to vector<8x1xf32>
      %191 = arith.subf %190, %90 : vector<8x1xf32>
      %192 = vector.broadcast %191 : vector<8x1xf32> to vector<8x5xf32>
      %193 = arith.mulf %101, %192 : vector<8x5xf32>
      %194 = arith.addf %189, %193 : vector<8x5xf32>
      %195 = arith.mulf %90, %176 : vector<8x1xf32>
      %196 = vector.broadcast %195 : vector<8x1xf32> to vector<8x32xf32>
      %197 = arith.mulf %135, %196 : vector<8x32xf32>
      %cst_52 = arith.constant 1.000000e+00 : f32
      %198 = vector.broadcast %cst_52 : f32 to vector<8x1xf32>
      %199 = arith.subf %198, %195 : vector<8x1xf32>
      %200 = vector.broadcast %199 : vector<8x1xf32> to vector<8x32xf32>
      %201 = arith.mulf %49, %200 : vector<8x32xf32>
      %202 = arith.addf %197, %201 : vector<8x32xf32>
      %203 = vector.broadcast %195 : vector<8x1xf32> to vector<8x32xf32>
      %204 = arith.mulf %167, %203 : vector<8x32xf32>
      %cst_53 = arith.constant 1.000000e+00 : f32
      %205 = vector.broadcast %cst_53 : f32 to vector<8x1xf32>
      %206 = arith.subf %205, %195 : vector<8x1xf32>
      %207 = vector.broadcast %206 : vector<8x1xf32> to vector<8x32xf32>
      %208 = arith.mulf %81, %207 : vector<8x32xf32>
      %209 = arith.addf %204, %208 : vector<8x32xf32>
      %210 = vector.extract_strided_slice %15 {offsets = [2, 0, 0], sizes = [1, 8, 8], strides = [1, 1, 1]} : vector<4x8x8xf32> to vector<1x8x8xf32>
      %211 = vector.shape_cast %210 : vector<1x8x8xf32> to vector<8x8xf32>
      %cst_54 = arith.constant dense<0.000000e+00> : vector<8x96xf32>
      %212 = tpu.matmul %211, %0, %cst_54 {dimension_numbers = #tpu.dot_dimension_numbers<[1], [0], [0], [1], [0, 0, 1, 1], [], []>} : vector<8x8xf32>, vector<8x96xf32>, vector<8x96xf32> -> vector<8x96xf32>
      %213 = vector.broadcast %2 : vector<1x96xf32> to vector<8x96xf32>
      %214 = arith.addf %212, %213 : vector<8x96xf32>
      %cst_55 = arith.constant dense<0.000000e+00> : vector<8x96xf32>
      %215 = tpu.matmul %135, %1, %cst_55 {dimension_numbers = #tpu.dot_dimension_numbers<[1], [0], [0], [1], [0, 0, 1, 1], [], []>} : vector<8x32xf32>, vector<32x96xf32>, vector<8x96xf32> -> vector<8x96xf32>
      %216 = vector.broadcast %3 : vector<1x96xf32> to vector<8x96xf32>
      %217 = arith.addf %215, %216 : vector<8x96xf32>
      %218 = vector.extract_strided_slice %214 {offsets = [0, 0], sizes = [8, 32], strides = [1, 1]} : vector<8x96xf32> to vector<8x32xf32>
      %219 = vector.extract_strided_slice %217 {offsets = [0, 0], sizes = [8, 32], strides = [1, 1]} : vector<8x96xf32> to vector<8x32xf32>
      %220 = arith.addf %218, %219 : vector<8x32xf32>
      %221 = arith.negf %220 : vector<8x32xf32>
      %222 = math.exp %221 : vector<8x32xf32>
      %cst_56 = arith.constant 1.000000e+00 : f32
      %223 = vector.broadcast %cst_56 : f32 to vector<8x32xf32>
      %224 = arith.addf %223, %222 : vector<8x32xf32>
      %225 = arith.divf %223, %224 : vector<8x32xf32>
      %226 = vector.extract_strided_slice %214 {offsets = [0, 32], sizes = [8, 32], strides = [1, 1]} : vector<8x96xf32> to vector<8x32xf32>
      %227 = vector.extract_strided_slice %217 {offsets = [0, 32], sizes = [8, 32], strides = [1, 1]} : vector<8x96xf32> to vector<8x32xf32>
      %228 = arith.addf %226, %227 : vector<8x32xf32>
      %229 = arith.negf %228 : vector<8x32xf32>
      %230 = math.exp %229 : vector<8x32xf32>
      %cst_57 = arith.constant 1.000000e+00 : f32
      %231 = vector.broadcast %cst_57 : f32 to vector<8x32xf32>
      %232 = arith.addf %231, %230 : vector<8x32xf32>
      %233 = arith.divf %231, %232 : vector<8x32xf32>
      %234 = vector.extract_strided_slice %214 {offsets = [0, 64], sizes = [8, 32], strides = [1, 1]} : vector<8x96xf32> to vector<8x32xf32>
      %235 = vector.extract_strided_slice %217 {offsets = [0, 64], sizes = [8, 32], strides = [1, 1]} : vector<8x96xf32> to vector<8x32xf32>
      %236 = arith.mulf %225, %235 : vector<8x32xf32>
      %237 = arith.addf %234, %236 : vector<8x32xf32>
      %238 = math.tanh %237 : vector<8x32xf32>
      %cst_58 = arith.constant 1.000000e+00 : f32
      %239 = vector.broadcast %cst_58 : f32 to vector<8x32xf32>
      %240 = arith.subf %239, %233 : vector<8x32xf32>
      %241 = arith.mulf %240, %238 : vector<8x32xf32>
      %242 = arith.mulf %233, %135 : vector<8x32xf32>
      %243 = arith.addf %241, %242 : vector<8x32xf32>
      %cst_59 = arith.constant dense<0.000000e+00> : vector<8x96xf32>
      %244 = tpu.matmul %243, %4, %cst_59 {dimension_numbers = #tpu.dot_dimension_numbers<[1], [0], [0], [1], [0, 0, 1, 1], [], []>} : vector<8x32xf32>, vector<32x96xf32>, vector<8x96xf32> -> vector<8x96xf32>
      %245 = vector.broadcast %6 : vector<1x96xf32> to vector<8x96xf32>
      %246 = arith.addf %244, %245 : vector<8x96xf32>
      %cst_60 = arith.constant dense<0.000000e+00> : vector<8x96xf32>
      %247 = tpu.matmul %167, %5, %cst_60 {dimension_numbers = #tpu.dot_dimension_numbers<[1], [0], [0], [1], [0, 0, 1, 1], [], []>} : vector<8x32xf32>, vector<32x96xf32>, vector<8x96xf32> -> vector<8x96xf32>
      %248 = vector.broadcast %7 : vector<1x96xf32> to vector<8x96xf32>
      %249 = arith.addf %247, %248 : vector<8x96xf32>
      %250 = vector.extract_strided_slice %246 {offsets = [0, 0], sizes = [8, 32], strides = [1, 1]} : vector<8x96xf32> to vector<8x32xf32>
      %251 = vector.extract_strided_slice %249 {offsets = [0, 0], sizes = [8, 32], strides = [1, 1]} : vector<8x96xf32> to vector<8x32xf32>
      %252 = arith.addf %250, %251 : vector<8x32xf32>
      %253 = arith.negf %252 : vector<8x32xf32>
      %254 = math.exp %253 : vector<8x32xf32>
      %cst_61 = arith.constant 1.000000e+00 : f32
      %255 = vector.broadcast %cst_61 : f32 to vector<8x32xf32>
      %256 = arith.addf %255, %254 : vector<8x32xf32>
      %257 = arith.divf %255, %256 : vector<8x32xf32>
      %258 = vector.extract_strided_slice %246 {offsets = [0, 32], sizes = [8, 32], strides = [1, 1]} : vector<8x96xf32> to vector<8x32xf32>
      %259 = vector.extract_strided_slice %249 {offsets = [0, 32], sizes = [8, 32], strides = [1, 1]} : vector<8x96xf32> to vector<8x32xf32>
      %260 = arith.addf %258, %259 : vector<8x32xf32>
      %261 = arith.negf %260 : vector<8x32xf32>
      %262 = math.exp %261 : vector<8x32xf32>
      %cst_62 = arith.constant 1.000000e+00 : f32
      %263 = vector.broadcast %cst_62 : f32 to vector<8x32xf32>
      %264 = arith.addf %263, %262 : vector<8x32xf32>
      %265 = arith.divf %263, %264 : vector<8x32xf32>
      %266 = vector.extract_strided_slice %246 {offsets = [0, 64], sizes = [8, 32], strides = [1, 1]} : vector<8x96xf32> to vector<8x32xf32>
      %267 = vector.extract_strided_slice %249 {offsets = [0, 64], sizes = [8, 32], strides = [1, 1]} : vector<8x96xf32> to vector<8x32xf32>
      %268 = arith.mulf %257, %267 : vector<8x32xf32>
      %269 = arith.addf %266, %268 : vector<8x32xf32>
      %270 = math.tanh %269 : vector<8x32xf32>
      %cst_63 = arith.constant 1.000000e+00 : f32
      %271 = vector.broadcast %cst_63 : f32 to vector<8x32xf32>
      %272 = arith.subf %271, %265 : vector<8x32xf32>
      %273 = arith.mulf %272, %270 : vector<8x32xf32>
      %274 = arith.mulf %265, %167 : vector<8x32xf32>
      %275 = arith.addf %273, %274 : vector<8x32xf32>
      %cst_64 = arith.constant dense<0.000000e+00> : vector<8x6xf32>
      %276 = tpu.matmul %275, %8, %cst_64 {dimension_numbers = #tpu.dot_dimension_numbers<[1], [0], [0], [1], [0, 0, 1, 1], [], []>} : vector<8x32xf32>, vector<32x6xf32>, vector<8x6xf32> -> vector<8x6xf32>
      %277 = vector.broadcast %9 : vector<1x6xf32> to vector<8x6xf32>
      %278 = arith.addf %276, %277 : vector<8x6xf32>
      %279 = vector.extract_strided_slice %278 {offsets = [0, 5], sizes = [8, 1], strides = [1, 1]} : vector<8x6xf32> to vector<8x1xf32>
      %280 = arith.negf %279 : vector<8x1xf32>
      %281 = math.exp %280 : vector<8x1xf32>
      %cst_65 = arith.constant 1.000000e+00 : f32
      %282 = vector.broadcast %cst_65 : f32 to vector<8x1xf32>
      %283 = arith.addf %282, %281 : vector<8x1xf32>
      %284 = arith.divf %282, %283 : vector<8x1xf32>
      %285 = vector.extract_strided_slice %278 {offsets = [0, 0], sizes = [8, 5], strides = [1, 1]} : vector<8x6xf32> to vector<8x5xf32>
      %cst_66 = arith.constant dense<0xFF800000> : vector<8xf32>
      %286 = vector.multi_reduction <maximumf>, %285, %cst_66 [1] : vector<8x5xf32> to vector<8xf32>
      %287 = vector.shape_cast %286 : vector<8xf32> to vector<8x1xf32>
      %288 = vector.broadcast %287 : vector<8x1xf32> to vector<8x5xf32>
      %289 = arith.subf %285, %288 : vector<8x5xf32>
      %290 = math.exp %289 : vector<8x5xf32>
      %cst_67 = arith.constant dense<0.000000e+00> : vector<8xf32>
      %291 = vector.multi_reduction <add>, %290, %cst_67 [1] : vector<8x5xf32> to vector<8xf32>
      %292 = vector.shape_cast %291 : vector<8xf32> to vector<8x1xf32>
      %293 = tpu.reciprocal %292 : vector<8x1xf32> -> vector<8x1xf32>
      %294 = vector.broadcast %293 : vector<8x1xf32> to vector<8x5xf32>
      %295 = arith.mulf %290, %294 : vector<8x5xf32>
      %296 = vector.broadcast %195 : vector<8x1xf32> to vector<8x5xf32>
      %297 = arith.mulf %295, %296 : vector<8x5xf32>
      %cst_68 = arith.constant 1.000000e+00 : f32
      %298 = vector.broadcast %cst_68 : f32 to vector<8x1xf32>
      %299 = arith.subf %298, %195 : vector<8x1xf32>
      %300 = vector.broadcast %299 : vector<8x1xf32> to vector<8x5xf32>
      %301 = arith.mulf %194, %300 : vector<8x5xf32>
      %302 = arith.addf %297, %301 : vector<8x5xf32>
      %303 = arith.mulf %195, %284 : vector<8x1xf32>
      %304 = vector.broadcast %303 : vector<8x1xf32> to vector<8x32xf32>
      %305 = arith.mulf %243, %304 : vector<8x32xf32>
      %cst_69 = arith.constant 1.000000e+00 : f32
      %306 = vector.broadcast %cst_69 : f32 to vector<8x1xf32>
      %307 = arith.subf %306, %303 : vector<8x1xf32>
      %308 = vector.broadcast %307 : vector<8x1xf32> to vector<8x32xf32>
      %309 = arith.mulf %202, %308 : vector<8x32xf32>
      %310 = arith.addf %305, %309 : vector<8x32xf32>
      %311 = vector.broadcast %303 : vector<8x1xf32> to vector<8x32xf32>
      %312 = arith.mulf %275, %311 : vector<8x32xf32>
      %cst_70 = arith.constant 1.000000e+00 : f32
      %313 = vector.broadcast %cst_70 : f32 to vector<8x1xf32>
      %314 = arith.subf %313, %303 : vector<8x1xf32>
      %315 = vector.broadcast %314 : vector<8x1xf32> to vector<8x32xf32>
      %316 = arith.mulf %209, %315 : vector<8x32xf32>
      %317 = arith.addf %312, %316 : vector<8x32xf32>
      %318 = vector.extract_strided_slice %15 {offsets = [3, 0, 0], sizes = [1, 8, 8], strides = [1, 1, 1]} : vector<4x8x8xf32> to vector<1x8x8xf32>
      %319 = vector.shape_cast %318 : vector<1x8x8xf32> to vector<8x8xf32>
      %cst_71 = arith.constant dense<0.000000e+00> : vector<8x96xf32>
      %320 = tpu.matmul %319, %0, %cst_71 {dimension_numbers = #tpu.dot_dimension_numbers<[1], [0], [0], [1], [0, 0, 1, 1], [], []>} : vector<8x8xf32>, vector<8x96xf32>, vector<8x96xf32> -> vector<8x96xf32>
      %321 = vector.broadcast %2 : vector<1x96xf32> to vector<8x96xf32>
      %322 = arith.addf %320, %321 : vector<8x96xf32>
      %cst_72 = arith.constant dense<0.000000e+00> : vector<8x96xf32>
      %323 = tpu.matmul %243, %1, %cst_72 {dimension_numbers = #tpu.dot_dimension_numbers<[1], [0], [0], [1], [0, 0, 1, 1], [], []>} : vector<8x32xf32>, vector<32x96xf32>, vector<8x96xf32> -> vector<8x96xf32>
      %324 = vector.broadcast %3 : vector<1x96xf32> to vector<8x96xf32>
      %325 = arith.addf %323, %324 : vector<8x96xf32>
      %326 = vector.extract_strided_slice %322 {offsets = [0, 0], sizes = [8, 32], strides = [1, 1]} : vector<8x96xf32> to vector<8x32xf32>
      %327 = vector.extract_strided_slice %325 {offsets = [0, 0], sizes = [8, 32], strides = [1, 1]} : vector<8x96xf32> to vector<8x32xf32>
      %328 = arith.addf %326, %327 : vector<8x32xf32>
      %329 = arith.negf %328 : vector<8x32xf32>
      %330 = math.exp %329 : vector<8x32xf32>
      %cst_73 = arith.constant 1.000000e+00 : f32
      %331 = vector.broadcast %cst_73 : f32 to vector<8x32xf32>
      %332 = arith.addf %331, %330 : vector<8x32xf32>
      %333 = arith.divf %331, %332 : vector<8x32xf32>
      %334 = vector.extract_strided_slice %322 {offsets = [0, 32], sizes = [8, 32], strides = [1, 1]} : vector<8x96xf32> to vector<8x32xf32>
      %335 = vector.extract_strided_slice %325 {offsets = [0, 32], sizes = [8, 32], strides = [1, 1]} : vector<8x96xf32> to vector<8x32xf32>
      %336 = arith.addf %334, %335 : vector<8x32xf32>
      %337 = arith.negf %336 : vector<8x32xf32>
      %338 = math.exp %337 : vector<8x32xf32>
      %cst_74 = arith.constant 1.000000e+00 : f32
      %339 = vector.broadcast %cst_74 : f32 to vector<8x32xf32>
      %340 = arith.addf %339, %338 : vector<8x32xf32>
      %341 = arith.divf %339, %340 : vector<8x32xf32>
      %342 = vector.extract_strided_slice %322 {offsets = [0, 64], sizes = [8, 32], strides = [1, 1]} : vector<8x96xf32> to vector<8x32xf32>
      %343 = vector.extract_strided_slice %325 {offsets = [0, 64], sizes = [8, 32], strides = [1, 1]} : vector<8x96xf32> to vector<8x32xf32>
      %344 = arith.mulf %333, %343 : vector<8x32xf32>
      %345 = arith.addf %342, %344 : vector<8x32xf32>
      %346 = math.tanh %345 : vector<8x32xf32>
      %cst_75 = arith.constant 1.000000e+00 : f32
      %347 = vector.broadcast %cst_75 : f32 to vector<8x32xf32>
      %348 = arith.subf %347, %341 : vector<8x32xf32>
      %349 = arith.mulf %348, %346 : vector<8x32xf32>
      %350 = arith.mulf %341, %243 : vector<8x32xf32>
      %351 = arith.addf %349, %350 : vector<8x32xf32>
      %cst_76 = arith.constant dense<0.000000e+00> : vector<8x96xf32>
      %352 = tpu.matmul %351, %4, %cst_76 {dimension_numbers = #tpu.dot_dimension_numbers<[1], [0], [0], [1], [0, 0, 1, 1], [], []>} : vector<8x32xf32>, vector<32x96xf32>, vector<8x96xf32> -> vector<8x96xf32>
      %353 = vector.broadcast %6 : vector<1x96xf32> to vector<8x96xf32>
      %354 = arith.addf %352, %353 : vector<8x96xf32>
      %cst_77 = arith.constant dense<0.000000e+00> : vector<8x96xf32>
      %355 = tpu.matmul %275, %5, %cst_77 {dimension_numbers = #tpu.dot_dimension_numbers<[1], [0], [0], [1], [0, 0, 1, 1], [], []>} : vector<8x32xf32>, vector<32x96xf32>, vector<8x96xf32> -> vector<8x96xf32>
      %356 = vector.broadcast %7 : vector<1x96xf32> to vector<8x96xf32>
      %357 = arith.addf %355, %356 : vector<8x96xf32>
      %358 = vector.extract_strided_slice %354 {offsets = [0, 0], sizes = [8, 32], strides = [1, 1]} : vector<8x96xf32> to vector<8x32xf32>
      %359 = vector.extract_strided_slice %357 {offsets = [0, 0], sizes = [8, 32], strides = [1, 1]} : vector<8x96xf32> to vector<8x32xf32>
      %360 = arith.addf %358, %359 : vector<8x32xf32>
      %361 = arith.negf %360 : vector<8x32xf32>
      %362 = math.exp %361 : vector<8x32xf32>
      %cst_78 = arith.constant 1.000000e+00 : f32
      %363 = vector.broadcast %cst_78 : f32 to vector<8x32xf32>
      %364 = arith.addf %363, %362 : vector<8x32xf32>
      %365 = arith.divf %363, %364 : vector<8x32xf32>
      %366 = vector.extract_strided_slice %354 {offsets = [0, 32], sizes = [8, 32], strides = [1, 1]} : vector<8x96xf32> to vector<8x32xf32>
      %367 = vector.extract_strided_slice %357 {offsets = [0, 32], sizes = [8, 32], strides = [1, 1]} : vector<8x96xf32> to vector<8x32xf32>
      %368 = arith.addf %366, %367 : vector<8x32xf32>
      %369 = arith.negf %368 : vector<8x32xf32>
      %370 = math.exp %369 : vector<8x32xf32>
      %cst_79 = arith.constant 1.000000e+00 : f32
      %371 = vector.broadcast %cst_79 : f32 to vector<8x32xf32>
      %372 = arith.addf %371, %370 : vector<8x32xf32>
      %373 = arith.divf %371, %372 : vector<8x32xf32>
      %374 = vector.extract_strided_slice %354 {offsets = [0, 64], sizes = [8, 32], strides = [1, 1]} : vector<8x96xf32> to vector<8x32xf32>
      %375 = vector.extract_strided_slice %357 {offsets = [0, 64], sizes = [8, 32], strides = [1, 1]} : vector<8x96xf32> to vector<8x32xf32>
      %376 = arith.mulf %365, %375 : vector<8x32xf32>
      %377 = arith.addf %374, %376 : vector<8x32xf32>
      %378 = math.tanh %377 : vector<8x32xf32>
      %cst_80 = arith.constant 1.000000e+00 : f32
      %379 = vector.broadcast %cst_80 : f32 to vector<8x32xf32>
      %380 = arith.subf %379, %373 : vector<8x32xf32>
      %381 = arith.mulf %380, %378 : vector<8x32xf32>
      %382 = arith.mulf %373, %275 : vector<8x32xf32>
      %383 = arith.addf %381, %382 : vector<8x32xf32>
      %cst_81 = arith.constant dense<0.000000e+00> : vector<8x6xf32>
      %384 = tpu.matmul %383, %8, %cst_81 {dimension_numbers = #tpu.dot_dimension_numbers<[1], [0], [0], [1], [0, 0, 1, 1], [], []>} : vector<8x32xf32>, vector<32x6xf32>, vector<8x6xf32> -> vector<8x6xf32>
      %385 = vector.broadcast %9 : vector<1x6xf32> to vector<8x6xf32>
      %386 = arith.addf %384, %385 : vector<8x6xf32>
      %387 = vector.extract_strided_slice %386 {offsets = [0, 5], sizes = [8, 1], strides = [1, 1]} : vector<8x6xf32> to vector<8x1xf32>
      %388 = arith.negf %387 : vector<8x1xf32>
      %389 = math.exp %388 : vector<8x1xf32>
      %cst_82 = arith.constant 1.000000e+00 : f32
      %390 = vector.broadcast %cst_82 : f32 to vector<8x1xf32>
      %391 = arith.addf %390, %389 : vector<8x1xf32>
      %392 = arith.divf %390, %391 : vector<8x1xf32>
      %393 = vector.extract_strided_slice %386 {offsets = [0, 0], sizes = [8, 5], strides = [1, 1]} : vector<8x6xf32> to vector<8x5xf32>
      %cst_83 = arith.constant dense<0xFF800000> : vector<8xf32>
      %394 = vector.multi_reduction <maximumf>, %393, %cst_83 [1] : vector<8x5xf32> to vector<8xf32>
      %395 = vector.shape_cast %394 : vector<8xf32> to vector<8x1xf32>
      %396 = vector.broadcast %395 : vector<8x1xf32> to vector<8x5xf32>
      %397 = arith.subf %393, %396 : vector<8x5xf32>
      %398 = math.exp %397 : vector<8x5xf32>
      %cst_84 = arith.constant dense<0.000000e+00> : vector<8xf32>
      %399 = vector.multi_reduction <add>, %398, %cst_84 [1] : vector<8x5xf32> to vector<8xf32>
      %400 = vector.shape_cast %399 : vector<8xf32> to vector<8x1xf32>
      %401 = tpu.reciprocal %400 : vector<8x1xf32> -> vector<8x1xf32>
      %402 = vector.broadcast %401 : vector<8x1xf32> to vector<8x5xf32>
      %403 = arith.mulf %398, %402 : vector<8x5xf32>
      %404 = vector.broadcast %303 : vector<8x1xf32> to vector<8x5xf32>
      %405 = arith.mulf %403, %404 : vector<8x5xf32>
      %cst_85 = arith.constant 1.000000e+00 : f32
      %406 = vector.broadcast %cst_85 : f32 to vector<8x1xf32>
      %407 = arith.subf %406, %303 : vector<8x1xf32>
      %408 = vector.broadcast %407 : vector<8x1xf32> to vector<8x5xf32>
      %409 = arith.mulf %302, %408 : vector<8x5xf32>
      %410 = arith.addf %405, %409 : vector<8x5xf32>
      %411 = arith.mulf %303, %392 : vector<8x1xf32>
      %412 = vector.broadcast %411 : vector<8x1xf32> to vector<8x32xf32>
      %413 = arith.mulf %351, %412 : vector<8x32xf32>
      %cst_86 = arith.constant 1.000000e+00 : f32
      %414 = vector.broadcast %cst_86 : f32 to vector<8x1xf32>
      %415 = arith.subf %414, %411 : vector<8x1xf32>
      %416 = vector.broadcast %415 : vector<8x1xf32> to vector<8x32xf32>
      %417 = arith.mulf %310, %416 : vector<8x32xf32>
      %418 = arith.addf %413, %417 : vector<8x32xf32>
      %419 = vector.broadcast %411 : vector<8x1xf32> to vector<8x32xf32>
      %420 = arith.mulf %383, %419 : vector<8x32xf32>
      %cst_87 = arith.constant 1.000000e+00 : f32
      %421 = vector.broadcast %cst_87 : f32 to vector<8x1xf32>
      %422 = arith.subf %421, %411 : vector<8x1xf32>
      %423 = vector.broadcast %422 : vector<8x1xf32> to vector<8x32xf32>
      %424 = arith.mulf %317, %423 : vector<8x32xf32>
      %425 = arith.addf %420, %424 : vector<8x32xf32>
      %426 = tpu.concatenate %410, %411 in 1 : vector<8x5xf32>, vector<8x1xf32> -> vector<8x6xf32>
      %427 = arith.index_cast %arg13 : i32 to index
      %c0_88 = arith.constant 0 : index
      %c0_89 = arith.constant 0 : index
      %428 = vector.load %arg12[%427, %c0_88, %c0_89] : memref<8x8x6xf32, #tpu.memory_space<vmem>>, vector<1x8x6xf32>
      %429 = vector.shape_cast %428 : vector<1x8x6xf32> to vector<8x6xf32>
      %430 = vector.shape_cast %426 : vector<8x6xf32> to vector<1x8x6xf32>
      tpu.vector_store %arg12[%427, %c0_88, %c0_89], %430 {strides = array<i32>} : memref<8x8x6xf32, #tpu.memory_space<vmem>>, vector<1x8x6xf32>,
      scf.yield %418, %425 : vector<8x32xf32>, vector<8x32xf32>
    }
    %c8_i32_19 = arith.constant 8 : i32
    return
  }
  func.func @transform_0(%arg0: i32) -> (i32, i32, i32, i32) {
    %c0_i32 = arith.constant 0 : i32
    %c0_i32_0 = arith.constant 0 : i32
    %c0_i32_1 = arith.constant 0 : i32
    %c0_i32_2 = arith.constant 0 : i32
    %c0_i32_3 = arith.constant 0 : i32
    return %c0_i32, %c0_i32_0, %c0_i32_1, %c0_i32_2 : i32, i32, i32, i32
  }
  func.func @transform_1(%arg0: i32) -> (i32, i32) {
    %c0_i32 = arith.constant 0 : i32
    %c0_i32_0 = arith.constant 0 : i32
    %c0_i32_1 = arith.constant 0 : i32
    return %c0_i32, %c0_i32_0 : i32, i32
  }
  func.func @transform_2(%arg0: i32) -> (i32, i32) {
    %c0_i32 = arith.constant 0 : i32
    %c0_i32_0 = arith.constant 0 : i32
    %c0_i32_1 = arith.constant 0 : i32
    return %c0_i32, %c0_i32_0 : i32, i32
  }
  func.func @transform_3(%arg0: i32) -> (i32, i32) {
    %c0_i32 = arith.constant 0 : i32
    %c0_i32_0 = arith.constant 0 : i32
    %c0_i32_1 = arith.constant 0 : i32
    return %c0_i32, %c0_i32_0 : i32, i32
  }
  func.func @transform_4(%arg0: i32) -> (i32, i32) {
    %c0_i32 = arith.constant 0 : i32
    %c0_i32_0 = arith.constant 0 : i32
    %c0_i32_1 = arith.constant 0 : i32
    return %c0_i32, %c0_i32_0 : i32, i32
  }
  func.func @transform_5(%arg0: i32) -> (i32, i32) {
    %c0_i32 = arith.constant 0 : i32
    %c0_i32_0 = arith.constant 0 : i32
    %c0_i32_1 = arith.constant 0 : i32
    return %c0_i32, %c0_i32_0 : i32, i32
  }
  func.func @transform_6(%arg0: i32) -> (i32, i32) {
    %c0_i32 = arith.constant 0 : i32
    %c0_i32_0 = arith.constant 0 : i32
    %c0_i32_1 = arith.constant 0 : i32
    return %c0_i32, %c0_i32_0 : i32, i32
  }
  func.func @transform_7(%arg0: i32) -> (i32, i32) {
    %c0_i32 = arith.constant 0 : i32
    %c0_i32_0 = arith.constant 0 : i32
    %c0_i32_1 = arith.constant 0 : i32
    return %c0_i32, %c0_i32_0 : i32, i32
  }
  func.func @transform_8(%arg0: i32) -> (i32, i32) {
    %c0_i32 = arith.constant 0 : i32
    %c0_i32_0 = arith.constant 0 : i32
    %c0_i32_1 = arith.constant 0 : i32
    return %c0_i32, %c0_i32_0 : i32, i32
  }
  func.func @transform_9(%arg0: i32) -> (i32, i32) {
    %c0_i32 = arith.constant 0 : i32
    %c0_i32_0 = arith.constant 0 : i32
    %c0_i32_1 = arith.constant 0 : i32
    return %c0_i32, %c0_i32_0 : i32, i32
  }
  func.func @transform_10(%arg0: i32) -> (i32, i32) {
    %c0_i32 = arith.constant 0 : i32
    %c0_i32_0 = arith.constant 0 : i32
    %c0_i32_1 = arith.constant 0 : i32
    return %c0_i32, %c0_i32_0 : i32, i32
  }
  func.func @transform_11(%arg0: i32) -> (i32, i32, i32) {
    %c0_i32 = arith.constant 0 : i32
    %c0_i32_0 = arith.constant 0 : i32
    %c0_i32_1 = arith.constant 0 : i32
    %c0_i32_2 = arith.constant 0 : i32
    return %c0_i32, %c0_i32_0, %c0_i32_1 : i32, i32, i32
  }
}

</mosaic_0001>

<llo_original>
// kernel: tpu_custom_call.1
$region0: #{tpu_custom_call.1}
  #allocation0 [shape = 'u32[]', space=smem, size = 0x4, offset = 0x4, fixed_abs, tag = 'smem constant byte address 0x4 - core index']
  #allocation1 [shape = 'u32[144,128]{1,0:T(1,128)}', space=vmem, size = 0x12000, scoped, tag = 'internal scratch']
  %s0 = inlined_call_operand.hbm [shape: f32[8,4,8,8], index: 0, kind: input, shape index: {}]
  %s1 = inlined_call_operand.vmem [shape: f32[8,96], index: 1, kind: input, shape index: {}]
  %s2 = inlined_call_operand.vmem [shape: f32[32,96], index: 2, kind: input, shape index: {}]
  %s3 = inlined_call_operand.vmem [shape: f32[1,96], index: 3, kind: input, shape index: {}]
  %s4 = inlined_call_operand.vmem [shape: f32[1,96], index: 4, kind: input, shape index: {}]
  %s5 = inlined_call_operand.hbm [shape: f32[32,96], index: 5, kind: input, shape index: {}]
  %s6 = inlined_call_operand.hbm [shape: f32[32,96], index: 6, kind: input, shape index: {}]
  %s7 = inlined_call_operand.vmem [shape: f32[1,96], index: 7, kind: input, shape index: {}]
  %s8 = inlined_call_operand.vmem [shape: f32[1,96], index: 8, kind: input, shape index: {}]
  %s9 = inlined_call_operand.vmem [shape: f32[32,6], index: 9, kind: input, shape index: {}]
  %s10 = inlined_call_operand.vmem [shape: f32[1,6], index: 10, kind: input, shape index: {}]
  %s11 = inlined_call_operand.vmem [shape: f32[8,8,6], index: 11, kind: output, shape index: {}]
  %s12 = sld [smem:[#allocation0]]
  $region73: #{tpu_custom_call.1} parent=0
    _
  %s14 = ssub.s32 1, %s12
  %s15 = scalar_select 0, %s14, %s12
  $region1: #{tpu_custom_call.1} parent=0
    #allocation2 [shape = 'u8[131072]{0}', space=vmem, size = 0x20000, scoped, tag = 'input window, operand 0, single buffered']
    #allocation3 [shape = 's32[1]{0}', space=sflag, size = 0x4, scoped, tag = 'scoped memory for tpu_custom_call.1']
    #allocation4 [shape = 'u8[16384]{0}', space=vmem, size = 0x4000, scoped, tag = 'input window, operand 5, single buffered']
    #allocation5 [shape = 's32[1]{0}', space=sflag, size = 0x4, scoped, tag = 'scoped memory for tpu_custom_call.1']
    #allocation6 [shape = 'u8[16384]{0}', space=vmem, size = 0x4000, scoped, tag = 'input window, operand 6, single buffered']
    %16 = vsyncpa [#allocation3], 0
    %17 = vsyncpa [#allocation5], 0
    // Predicated region
    $region2: #{tpu_custom_call.1} parent=1 // pred_check
      _
    $region3: #{tpu_custom_call.1} parent=1 // pred_check_branch
      %19 = sbr.rel (0) target = $region5
    $region4: #{tpu_custom_call.1} parent=1 // pred_region
      %s21 = ssub.s32 4096, 4096
      %22 = vsyncadd [#allocation3], %s21
      %s23 = sshll.u32 [#allocation2], 4
      %s24 = int_to_ptr.vmem [resolvable:$true] %s23
      %29 = dma.hbm_to_vmem [thread:$0]  %s0, 4096, %s24, [#allocation3], 128, 128, 8
    $region5: #{tpu_custom_call.1} parent=1 // pred_fallthru
      _
    // Predicated region
    $region6: #{tpu_custom_call.1} parent=1 // pred_check
      _
    $region7: #{tpu_custom_call.1} parent=1 // pred_check_branch
      %31 = sbr.rel (0) target = $region9
    $region8: #{tpu_custom_call.1} parent=1 // pred_region
      _
    $region9: #{tpu_custom_call.1} parent=1 // pred_fallthru
      _
    // Predicated region
    $region10: #{tpu_custom_call.1} parent=1 // pred_check
      _
    $region11: #{tpu_custom_call.1} parent=1 // pred_check_branch
      %33 = sbr.rel (0) target = $region13
    $region12: #{tpu_custom_call.1} parent=1 // pred_region
      _
    $region13: #{tpu_custom_call.1} parent=1 // pred_fallthru
      _
    // Predicated region
    $region14: #{tpu_custom_call.1} parent=1 // pred_check
      _
    $region15: #{tpu_custom_call.1} parent=1 // pred_check_branch
      %35 = sbr.rel (0) target = $region17
    $region16: #{tpu_custom_call.1} parent=1 // pred_region
      _
    $region17: #{tpu_custom_call.1} parent=1 // pred_fallthru
      _
    // Predicated region
    $region18: #{tpu_custom_call.1} parent=1 // pred_check
      _
    $region19: #{tpu_custom_call.1} parent=1 // pred_check_branch
      %37 = sbr.rel (0) target = $region21
    $region20: #{tpu_custom_call.1} parent=1 // pred_region
      _
    $region21: #{tpu_custom_call.1} parent=1 // pred_fallthru
      _
    // Predicated region
    $region22: #{tpu_custom_call.1} parent=1 // pred_check
      _
    $region23: #{tpu_custom_call.1} parent=1 // pred_check_branch
      %39 = sbr.rel (0) target = $region25
    $region24: #{tpu_custom_call.1} parent=1 // pred_region
      %s41 = ssub.s32 512, 512
      %42 = vsyncadd [#allocation5], %s41
      %s43 = sshll.u32 [#allocation4], 4
      %s44 = int_to_ptr.vmem [resolvable:$true] %s43
      %49 = dma.hbm_to_vmem [thread:$0]  %s5, 512, %s44, [#allocation5], 128, 128, 8
    $region25: #{tpu_custom_call.1} parent=1 // pred_fallthru
      _
    // Predicated region
    $region26: #{tpu_custom_call.1} parent=1 // pred_check
      _
    $region27: #{tpu_custom_call.1} parent=1 // pred_check_branch
      %51 = sbr.rel (0) target = $region29
    $region28: #{tpu_custom_call.1} parent=1 // pred_region
      %s53 = ssub.s32 512, 512
      %54 = vsyncadd [#allocation5], %s53
      %s55 = sshll.u32 [#allocation6], 4
      %s56 = int_to_ptr.vmem [resolvable:$true] %s55
      %61 = dma.hbm_to_vmem [thread:$0]  %s6, 512, %s56, [#allocation5], 128, 128, 8
    $region29: #{tpu_custom_call.1} parent=1 // pred_fallthru
      _
    // Predicated region
    $region30: #{tpu_custom_call.1} parent=1 // pred_check
      _
    $region31: #{tpu_custom_call.1} parent=1 // pred_check_branch
      %63 = sbr.rel (0) target = $region33
    $region32: #{tpu_custom_call.1} parent=1 // pred_region
      _
    $region33: #{tpu_custom_call.1} parent=1 // pred_fallthru
      _
    // Predicated region
    $region34: #{tpu_custom_call.1} parent=1 // pred_check
      _
    $region35: #{tpu_custom_call.1} parent=1 // pred_check_branch
      %65 = sbr.rel (0) target = $region37
    $region36: #{tpu_custom_call.1} parent=1 // pred_region
      _
    $region37: #{tpu_custom_call.1} parent=1 // pred_fallthru
      _
    // Predicated region
    $region38: #{tpu_custom_call.1} parent=1 // pred_check
      _
    $region39: #{tpu_custom_call.1} parent=1 // pred_check_branch
      %67 = sbr.rel (0) target = $region41
    $region40: #{tpu_custom_call.1} parent=1 // pred_region
      _
    $region41: #{tpu_custom_call.1} parent=1 // pred_fallthru
      _
    // Predicated region
    $region42: #{tpu_custom_call.1} parent=1 // pred_check
      _
    $region43: #{tpu_custom_call.1} parent=1 // pred_check_branch
      %69 = sbr.rel (0) target = $region45
    $region44: #{tpu_custom_call.1} parent=1 // pred_region
      _
    $region45: #{tpu_custom_call.1} parent=1 // pred_fallthru
      _
    // Predicated region
    $region46: #{tpu_custom_call.1} parent=1 // pred_check
      _
    $region47: #{tpu_custom_call.1} parent=1 // pred_check_branch
      %71 = sbr.rel (0) target = $region49
    $region48: #{tpu_custom_call.1} parent=1 // pred_region
      %72 = dma.done [#allocation3], 4096
    $region49: #{tpu_custom_call.1} parent=1 // pred_fallthru
      _
    // Predicated region
    $region50: #{tpu_custom_call.1} parent=1 // pred_check
      _
    $region51: #{tpu_custom_call.1} parent=1 // pred_check_branch
      %74 = sbr.rel (0) target = $region53
    $region52: #{tpu_custom_call.1} parent=1 // pred_region
      %75 = dma.done [#allocation5], 512
    $region53: #{tpu_custom_call.1} parent=1 // pred_fallthru
      _
    // Predicated region
    $region54: #{tpu_custom_call.1} parent=1 // pred_check
      _
    $region55: #{tpu_custom_call.1} parent=1 // pred_check_branch
      %77 = sbr.rel (0) target = $region57
    $region56: #{tpu_custom_call.1} parent=1 // pred_region
      %78 = dma.done [#allocation5], 512
    $region57: #{tpu_custom_call.1} parent=1 // pred_fallthru
      _
    %v79 = vld [vmem:[%s1] sm:$0xff]
    %v80 = vld [vmem:[%s2] sm:$0xff]
    %v81 = vld [vmem:[%s2 + $0x8] sm:$0xff]
    %v82 = vld [vmem:[%s2 + $0x10] sm:$0xff]
    %v83 = vld [vmem:[%s2 + $0x18] sm:$0xff]
    %v84 = vld [vmem:[%s3] sm:$0x1]
    %v85 = vld [vmem:[%s4] sm:$0x1]
    %v86 = vld [vmem:[#allocation4] sm:$0xff]
    %v87 = vld [vmem:[#allocation4 + $0x8] sm:$0xff]
    %v88 = vld [vmem:[#allocation4 + $0x10] sm:$0xff]
    %v89 = vld [vmem:[#allocation4 + $0x18] sm:$0xff]
    %v90 = vld [vmem:[#allocation6] sm:$0xff]
    %v91 = vld [vmem:[#allocation6 + $0x8] sm:$0xff]
    %v92 = vld [vmem:[#allocation6 + $0x10] sm:$0xff]
    %v93 = vld [vmem:[#allocation6 + $0x18] sm:$0xff]
    %v94 = vld [vmem:[%s7] sm:$0x1]
    %v95 = vld [vmem:[%s8] sm:$0x1]
    %v96 = vld [vmem:[%s9] sm:$0xff]
    %v97 = vld [vmem:[%s9 + $0x8] sm:$0xff]
    %v98 = vld [vmem:[%s9 + $0x10] sm:$0xff]
    %v99 = vld [vmem:[%s9 + $0x18] sm:$0xff]
    %v100 = vld [vmem:[%s10] sm:$0x1]
    loop: start=0, step=1, limit=8
    $region58: #{tpu_custom_call.1} parent=1 // loop_pre_header
      _
    $region59: #{tpu_custom_call.1} parent=1 // loop_header
      %s102 = sphi 0, %s106
      %p103 = scmp.ge.s32.totalorder %s102, 8
      %v107 = vphi 0.0, %v1956
      %v108 = vphi 0.0, %v1959
    $region60: #{tpu_custom_call.1} parent=1 // loop_header_branch
      %105 = sbr.rel (%p103) target = $region64
    $region61: #{tpu_custom_call.1} parent=1 // loop_body
      %s109 = smul.u32 %s102, 32
      %s110 = scalar_lea.vmem [#allocation2], %s109
      %v111 = vld [vmem:[%s110] sm:$0xff]
      %v112 = vld [vmem:[%s110 + $0x8] sm:$0xff]
      %v113 = vld [vmem:[%s110 + $0x10] sm:$0xff]
      %v114 = vld [vmem:[%s110 + $0x18] sm:$0xff]
      %v116 = vlaneseq
      %v117 = vshrl.u32 %v116, 7
      %v118 = vsub.s32 0, %v117
      %v119 = vrot.slane %v84, %v118
      %vm121 = vcmask 64512
      %v123 = vsel %vm121, %v111, 0
      %125 = vmatprep.subr.mxu0 0.0
      %126 = vmatpush1.msra.mxu0 %v79
      %127 = vmatprep.subr.mxu0 0.0
      %128 = vmatpush1.msra.mxu0 0.0
      %129 = vmatprep.subr.mxu0 0.0
      %130 = vmatpush1.msra.mxu0 0.0
      %131 = vmatprep.subr.mxu0 0.0
      %132 = vmatpush1.msra.mxu0 0.0
      %133 = vmatprep.subr.mxu0 0.0
      %134 = vmatpush1.msra.mxu0 0.0
      %135 = vmatprep.subr.mxu0 0.0
      %136 = vmatpush1.msra.mxu0 0.0
      %137 = vmatprep.subr.mxu0 0.0
      %138 = vmatpush1.msra.mxu0 0.0
      %139 = vmatprep.subr.mxu0 0.0
      %140 = vmatpush1.msra.mxu0 0.0
      %141 = vmatprep.subr.mxu0 0.0
      %142 = vmatpush1.msra.mxu0 0.0
      %143 = vmatprep.subr.mxu0 0.0
      %144 = vmatpush1.msra.mxu0 0.0
      %145 = vmatprep.subr.mxu0 0.0
      %146 = vmatpush1.msra.mxu0 0.0
      %147 = vmatprep.subr.mxu0 0.0
      %148 = vmatpush1.msra.mxu0 0.0
      %149 = vmatprep.subr.mxu0 0.0
      %150 = vmatpush1.msra.mxu0 0.0
      %151 = vmatprep.subr.mxu0 0.0
      %152 = vmatpush1.msra.mxu0 0.0
      %153 = vmatprep.subr.mxu0 0.0
      %154 = vmatpush1.msra.mxu0 0.0
      %155 = vmatprep.subr.mxu0 0.0
      %156 = vmatpush1.msra.mxu0 0.0
      %157 = vmatprep.subr.mxu0 0.0
      %158 = vmatpush1.msra.mxu0 0.0
      %159 = vmatprep.subr.mxu0 0.0
      %160 = vmatpush1.msra.mxu0 0.0
      %161 = vmatprep.subr.mxu0 0.0
      %162 = vmatpush1.msra.mxu0 0.0
      %163 = vmatprep.subr.mxu0 0.0
      %164 = vmatpush1.msra.mxu0 0.0
      %165 = vmatprep.subr.mxu0 0.0
      %166 = vmatpush1.msra.mxu0 0.0
      %167 = vmatprep.subr.mxu0 0.0
      %168 = vmatpush1.msra.mxu0 0.0
      %169 = vmatprep.subr.mxu0 0.0
      %170 = vmatpush1.msra.mxu0 0.0
      %171 = vmatprep.subr.mxu0 0.0
      %172 = vmatpush1.msra.mxu0 0.0
      %173 = vmatprep.subr.mxu0 0.0
      %174 = vmatpush1.msra.mxu0 0.0
      %175 = vmatprep.subr.mxu0 0.0
      %176 = vmatpush1.msra.mxu0 0.0
      %177 = vmatprep.subr.mxu0 0.0
      %178 = vmatpush1.msra.mxu0 0.0
      %179 = vmatprep.subr.mxu0 0.0
      %180 = vmatpush1.msra.mxu0 0.0
      %181 = vmatprep.subr.mxu0 0.0
      %182 = vmatpush1.msra.mxu0 0.0
      %183 = vmatprep.subr.mxu0 0.0
      %184 = vmatpush1.msra.mxu0 0.0
      %185 = vmatprep.subr.mxu0 0.0
      %186 = vmatpush1.msra.mxu0 0.0
      %187 = vmatprep.subr.mxu0 0.0
      %188 = vmatpush1.msra.mxu0 0.0
      %189 = vmatprep.mubr.f32.mxu0 0.0
      %190 = vmatmul.mubr.f32.gmra.mrb[0].mxu0 %v123
      %v191 = vpop.f32.mrb[0].mxu0
      %v192 = vadd.f32 %v119, %v191
      %v193 = vpop.f32.mrb[0].mxu0
      %194 = vdwg.mxu0
      %v196 = vlaneseq
      %v197 = vshrl.u32 %v196, 7
      %v198 = vsub.s32 0, %v197
      %v199 = vrot.slane %v85, %v198
      %202 = vrot.lane.b32.xlu0 %v107, 96
      %v203 = vpop.permute.xlu0 %202
      %vm204 = vcmask 261120
      %v205 = vsel %vm204, %v203, 0
      %207 = vmatprep.subr.mxu0 0.0
      %208 = vmatpush1.msra.mxu0 %v80
      %209 = vmatprep.subr.mxu0 0.0
      %210 = vmatpush1.msra.mxu0 %v81
      %211 = vmatprep.subr.mxu0 0.0
      %212 = vmatpush1.msra.mxu0 %v82
      %213 = vmatprep.subr.mxu0 0.0
      %214 = vmatpush1.msra.mxu0 %v83
      %215 = vmatprep.subr.mxu0 0.0
      %216 = vmatpush1.msra.mxu0 0.0
      %217 = vmatprep.subr.mxu0 0.0
      %218 = vmatpush1.msra.mxu0 0.0
      %219 = vmatprep.subr.mxu0 0.0
      %220 = vmatpush1.msra.mxu0 0.0
      %221 = vmatprep.subr.mxu0 0.0
      %222 = vmatpush1.msra.mxu0 0.0
      %223 = vmatprep.subr.mxu0 0.0
      %224 = vmatpush1.msra.mxu0 0.0
      %225 = vmatprep.subr.mxu0 0.0
      %226 = vmatpush1.msra.mxu0 0.0
      %227 = vmatprep.subr.mxu0 0.0
      %228 = vmatpush1.msra.mxu0 0.0
      %229 = vmatprep.subr.mxu0 0.0
      %230 = vmatpush1.msra.mxu0 0.0
      %231 = vmatprep.subr.mxu0 0.0
      %232 = vmatpush1.msra.mxu0 0.0
      %233 = vmatprep.subr.mxu0 0.0
      %234 = vmatpush1.msra.mxu0 0.0
      %235 = vmatprep.subr.mxu0 0.0
      %236 = vmatpush1.msra.mxu0 0.0
      %237 = vmatprep.subr.mxu0 0.0
      %238 = vmatpush1.msra.mxu0 0.0
      %239 = vmatprep.subr.mxu0 0.0
      %240 = vmatpush1.msra.mxu0 0.0
      %241 = vmatprep.subr.mxu0 0.0
      %242 = vmatpush1.msra.mxu0 0.0
      %243 = vmatprep.subr.mxu0 0.0
      %244 = vmatpush1.msra.mxu0 0.0
      %245 = vmatprep.subr.mxu0 0.0
      %246 = vmatpush1.msra.mxu0 0.0
      %247 = vmatprep.subr.mxu0 0.0
      %248 = vmatpush1.msra.mxu0 0.0
      %249 = vmatprep.subr.mxu0 0.0
      %250 = vmatpush1.msra.mxu0 0.0
      %251 = vmatprep.subr.mxu0 0.0
      %252 = vmatpush1.msra.mxu0 0.0
      %253 = vmatprep.subr.mxu0 0.0
      %254 = vmatpush1.msra.mxu0 0.0
      %255 = vmatprep.subr.mxu0 0.0
      %256 = vmatpush1.msra.mxu0 0.0
      %257 = vmatprep.subr.mxu0 0.0
      %258 = vmatpush1.msra.mxu0 0.0
      %259 = vmatprep.subr.mxu0 0.0
      %260 = vmatpush1.msra.mxu0 0.0
      %261 = vmatprep.subr.mxu0 0.0
      %262 = vmatpush1.msra.mxu0 0.0
      %263 = vmatprep.subr.mxu0 0.0
      %264 = vmatpush1.msra.mxu0 0.0
      %265 = vmatprep.subr.mxu0 0.0
      %266 = vmatpush1.msra.mxu0 0.0
      %267 = vmatprep.subr.mxu0 0.0
      %268 = vmatpush1.msra.mxu0 0.0
      %269 = vmatprep.subr.mxu0 0.0
      %270 = vmatpush1.msra.mxu0 0.0
      %271 = vmatprep.mubr.f32.mxu0 0.0
      %272 = vmatmul.mubr.f32.gmra.mrb[0].mxu0 %v205
      %v273 = vpop.f32.mrb[0].mxu0
      %v274 = vadd.f32 %v199, %v273
      %v275 = vpop.f32.mrb[0].mxu0
      %276 = vdwg.mxu0
      %v277 = vadd.f32 %v192, %v274
      %v278 = vxor.u32 %v277, 2147483648
      %v279 = vmul.f32 %v278, 1.442695
      %v280 = vpow.pop %v279
      %v281 = vadd.f32 %v280, 1.0
      %v282 = vrcp.pop %v281
      %v283 = vmul.f32 1.0, %v282
      %285 = vrot.lane.b32.xlu0 %v274, 64
      %v286 = vpop.permute.xlu0 %285
      %v288 = vmul.f32 %v283, %v286
      %290 = vrot.lane.b32.xlu0 %v288, 64
      %v291 = vpop.permute.xlu0 %290
      %v293 = vadd.f32 %v192, %v291
      %v294 = vtanh.pop %v293
      %v295 = vsub.f32 1.0, %v283
      %297 = vrot.lane.b32.xlu0 %v294, 96
      %v298 = vpop.permute.xlu0 %297
      %v300 = vmul.f32 %v295, %v298
      %v301 = vmul.f32 %v283, %v107
      %v302 = vadd.f32 %v300, %v301
      %v304 = vlaneseq
      %v305 = vshrl.u32 %v304, 7
      %v306 = vsub.s32 0, %v305
      %v307 = vrot.slane %v94, %v306
      %310 = vrot.lane.b32.xlu0 %v302, 96
      %v311 = vpop.permute.xlu0 %310
      %v312 = vsel %vm204, %v311, 0
      %314 = vmatprep.subr.mxu0 0.0
      %315 = vmatpush1.msra.mxu0 %v86
      %316 = vmatprep.subr.mxu0 0.0
      %317 = vmatpush1.msra.mxu0 %v87
      %318 = vmatprep.subr.mxu0 0.0
      %319 = vmatpush1.msra.mxu0 %v88
      %320 = vmatprep.subr.mxu0 0.0
      %321 = vmatpush1.msra.mxu0 %v89
      %322 = vmatprep.subr.mxu0 0.0
      %323 = vmatpush1.msra.mxu0 0.0
      %324 = vmatprep.subr.mxu0 0.0
      %325 = vmatpush1.msra.mxu0 0.0
      %326 = vmatprep.subr.mxu0 0.0
      %327 = vmatpush1.msra.mxu0 0.0
      %328 = vmatprep.subr.mxu0 0.0
      %329 = vmatpush1.msra.mxu0 0.0
      %330 = vmatprep.subr.mxu0 0.0
      %331 = vmatpush1.msra.mxu0 0.0
      %332 = vmatprep.subr.mxu0 0.0
      %333 = vmatpush1.msra.mxu0 0.0
      %334 = vmatprep.subr.mxu0 0.0
      %335 = vmatpush1.msra.mxu0 0.0
      %336 = vmatprep.subr.mxu0 0.0
      %337 = vmatpush1.msra.mxu0 0.0
      %338 = vmatprep.subr.mxu0 0.0
      %339 = vmatpush1.msra.mxu0 0.0
      %340 = vmatprep.subr.mxu0 0.0
      %341 = vmatpush1.msra.mxu0 0.0
      %342 = vmatprep.subr.mxu0 0.0
      %343 = vmatpush1.msra.mxu0 0.0
      %344 = vmatprep.subr.mxu0 0.0
      %345 = vmatpush1.msra.mxu0 0.0
      %346 = vmatprep.subr.mxu0 0.0
      %347 = vmatpush1.msra.mxu0 0.0
      %348 = vmatprep.subr.mxu0 0.0
      %349 = vmatpush1.msra.mxu0 0.0
      %350 = vmatprep.subr.mxu0 0.0
      %351 = vmatpush1.msra.mxu0 0.0
      %352 = vmatprep.subr.mxu0 0.0
      %353 = vmatpush1.msra.mxu0 0.0
      %354 = vmatprep.subr.mxu0 0.0
      %355 = vmatpush1.msra.mxu0 0.0
      %356 = vmatprep.subr.mxu0 0.0
      %357 = vmatpush1.msra.mxu0 0.0
      %358 = vmatprep.subr.mxu0 0.0
      %359 = vmatpush1.msra.mxu0 0.0
      %360 = vmatprep.subr.mxu0 0.0
      %361 = vmatpush1.msra.mxu0 0.0
      %362 = vmatprep.subr.mxu0 0.0
      %363 = vmatpush1.msra.mxu0 0.0
      %364 = vmatprep.subr.mxu0 0.0
      %365 = vmatpush1.msra.mxu0 0.0
      %366 = vmatprep.subr.mxu0 0.0
      %367 = vmatpush1.msra.mxu0 0.0
      %368 = vmatprep.subr.mxu0 0.0
      %369 = vmatpush1.msra.mxu0 0.0
      %370 = vmatprep.subr.mxu0 0.0
      %371 = vmatpush1.msra.mxu0 0.0
      %372 = vmatprep.subr.mxu0 0.0
      %373 = vmatpush1.msra.mxu0 0.0
      %374 = vmatprep.subr.mxu0 0.0
      %375 = vmatpush1.msra.mxu0 0.0
      %376 = vmatprep.subr.mxu0 0.0
      %377 = vmatpush1.msra.mxu0 0.0
      %378 = vmatprep.mubr.f32.mxu0 0.0
      %379 = vmatmul.mubr.f32.gmra.mrb[0].mxu0 %v312
      %v380 = vpop.f32.mrb[0].mxu0
      %v381 = vadd.f32 %v307, %v380
      %v382 = vpop.f32.mrb[0].mxu0
      %383 = vdwg.mxu0
      %v385 = vlaneseq
      %v386 = vshrl.u32 %v385, 7
      %v387 = vsub.s32 0, %v386
      %v388 = vrot.slane %v95, %v387
      %391 = vrot.lane.b32.xlu0 %v108, 96
      %v392 = vpop.permute.xlu0 %391
      %v393 = vsel %vm204, %v392, 0
      %395 = vmatprep.subr.mxu0 0.0
      %396 = vmatpush1.msra.mxu0 %v90
      %397 = vmatprep.subr.mxu0 0.0
      %398 = vmatpush1.msra.mxu0 %v91
      %399 = vmatprep.subr.mxu0 0.0
      %400 = vmatpush1.msra.mxu0 %v92
      %401 = vmatprep.subr.mxu0 0.0
      %402 = vmatpush1.msra.mxu0 %v93
      %403 = vmatprep.subr.mxu0 0.0
      %404 = vmatpush1.msra.mxu0 0.0
      %405 = vmatprep.subr.mxu0 0.0
      %406 = vmatpush1.msra.mxu0 0.0
      %407 = vmatprep.subr.mxu0 0.0
      %408 = vmatpush1.msra.mxu0 0.0
      %409 = vmatprep.subr.mxu0 0.0
      %410 = vmatpush1.msra.mxu0 0.0
      %411 = vmatprep.subr.mxu0 0.0
      %412 = vmatpush1.msra.mxu0 0.0
      %413 = vmatprep.subr.mxu0 0.0
      %414 = vmatpush1.msra.mxu0 0.0
      %415 = vmatprep.subr.mxu0 0.0
      %416 = vmatpush1.msra.mxu0 0.0
      %417 = vmatprep.subr.mxu0 0.0
      %418 = vmatpush1.msra.mxu0 0.0
      %419 = vmatprep.subr.mxu0 0.0
      %420 = vmatpush1.msra.mxu0 0.0
      %421 = vmatprep.subr.mxu0 0.0
      %422 = vmatpush1.msra.mxu0 0.0
      %423 = vmatprep.subr.mxu0 0.0
      %424 = vmatpush1.msra.mxu0 0.0
      %425 = vmatprep.subr.mxu0 0.0
      %426 = vmatpush1.msra.mxu0 0.0
      %427 = vmatprep.subr.mxu0 0.0
      %428 = vmatpush1.msra.mxu0 0.0
      %429 = vmatprep.subr.mxu0 0.0
      %430 = vmatpush1.msra.mxu0 0.0
      %431 = vmatprep.subr.mxu0 0.0
      %432 = vmatpush1.msra.mxu0 0.0
      %433 = vmatprep.subr.mxu0 0.0
      %434 = vmatpush1.msra.mxu0 0.0
      %435 = vmatprep.subr.mxu0 0.0
      %436 = vmatpush1.msra.mxu0 0.0
      %437 = vmatprep.subr.mxu0 0.0
      %438 = vmatpush1.msra.mxu0 0.0
      %439 = vmatprep.subr.mxu0 0.0
      %440 = vmatpush1.msra.mxu0 0.0
      %441 = vmatprep.subr.mxu0 0.0
      %442 = vmatpush1.msra.mxu0 0.0
      %443 = vmatprep.subr.mxu0 0.0
      %444 = vmatpush1.msra.mxu0 0.0
      %445 = vmatprep.subr.mxu0 0.0
      %446 = vmatpush1.msra.mxu0 0.0
      %447 = vmatprep.subr.mxu0 0.0
      %448 = vmatpush1.msra.mxu0 0.0
      %449 = vmatprep.subr.mxu0 0.0
      %450 = vmatpush1.msra.mxu0 0.0
      %451 = vmatprep.subr.mxu0 0.0
      %452 = vmatpush1.msra.mxu0 0.0
      %453 = vmatprep.subr.mxu0 0.0
      %454 = vmatpush1.msra.mxu0 0.0
      %455 = vmatprep.subr.mxu0 0.0
      %456 = vmatpush1.msra.mxu0 0.0
      %457 = vmatprep.subr.mxu0 0.0
      %458 = vmatpush1.msra.mxu0 0.0
      %459 = vmatprep.mubr.f32.mxu0 0.0
      %460 = vmatmul.mubr.f32.gmra.mrb[0].mxu0 %v393
      %v461 = vpop.f32.mrb[0].mxu0
      %v462 = vadd.f32 %v388, %v461
      %v463 = vpop.f32.mrb[0].mxu0
      %464 = vdwg.mxu0
      %v465 = vadd.f32 %v381, %v462
      %v466 = vxor.u32 %v465, 2147483648
      %v467 = vmul.f32 %v466, 1.442695
      %v468 = vpow.pop %v467
      %v469 = vadd.f32 %v468, 1.0
      %v470 = vrcp.pop %v469
      %v471 = vmul.f32 1.0, %v470
      %473 = vrot.lane.b32.xlu0 %v462, 64
      %v474 = vpop.permute.xlu0 %473
      %v476 = vmul.f32 %v471, %v474
      %478 = vrot.lane.b32.xlu0 %v476, 64
      %v479 = vpop.permute.xlu0 %478
      %v481 = vadd.f32 %v381, %v479
      %v482 = vtanh.pop %v481
      %v483 = vsub.f32 1.0, %v471
      %485 = vrot.lane.b32.xlu0 %v482, 96
      %v486 = vpop.permute.xlu0 %485
      %v488 = vmul.f32 %v483, %v486
      %v489 = vmul.f32 %v471, %v108
      %v490 = vadd.f32 %v488, %v489
      %v492 = vlaneseq
      %v493 = vshrl.u32 %v492, 7
      %v494 = vsub.s32 0, %v493
      %v495 = vrot.slane %v100, %v494
      %498 = vrot.lane.b32.xlu0 %v490, 96
      %v499 = vpop.permute.xlu0 %498
      %v500 = vsel %vm204, %v499, 0
      %502 = vmatprep.subr.mxu0 0.0
      %503 = vmatpush1.msra.mxu0 %v96
      %504 = vmatprep.subr.mxu0 0.0
      %505 = vmatpush1.msra.mxu0 %v97
      %506 = vmatprep.subr.mxu0 0.0
      %507 = vmatpush1.msra.mxu0 %v98
      %508 = vmatprep.subr.mxu0 0.0
      %509 = vmatpush1.msra.mxu0 %v99
      %510 = vmatprep.subr.mxu0 0.0
      %511 = vmatpush1.msra.mxu0 0.0
      %512 = vmatprep.subr.mxu0 0.0
      %513 = vmatpush1.msra.mxu0 0.0
      %514 = vmatprep.subr.mxu0 0.0
      %515 = vmatpush1.msra.mxu0 0.0
      %516 = vmatprep.subr.mxu0 0.0
      %517 = vmatpush1.msra.mxu0 0.0
      %518 = vmatprep.subr.mxu0 0.0
      %519 = vmatpush1.msra.mxu0 0.0
      %520 = vmatprep.subr.mxu0 0.0
      %521 = vmatpush1.msra.mxu0 0.0
      %522 = vmatprep.subr.mxu0 0.0
      %523 = vmatpush1.msra.mxu0 0.0
      %524 = vmatprep.subr.mxu0 0.0
      %525 = vmatpush1.msra.mxu0 0.0
      %526 = vmatprep.subr.mxu0 0.0
      %527 = vmatpush1.msra.mxu0 0.0
      %528 = vmatprep.subr.mxu0 0.0
      %529 = vmatpush1.msra.mxu0 0.0
      %530 = vmatprep.subr.mxu0 0.0
      %531 = vmatpush1.msra.mxu0 0.0
      %532 = vmatprep.subr.mxu0 0.0
      %533 = vmatpush1.msra.mxu0 0.0
      %534 = vmatprep.subr.mxu0 0.0
      %535 = vmatpush1.msra.mxu0 0.0
      %536 = vmatprep.subr.mxu0 0.0
      %537 = vmatpush1.msra.mxu0 0.0
      %538 = vmatprep.subr.mxu0 0.0
      %539 = vmatpush1.msra.mxu0 0.0
      %540 = vmatprep.subr.mxu0 0.0
      %541 = vmatpush1.msra.mxu0 0.0
      %542 = vmatprep.subr.mxu0 0.0
      %543 = vmatpush1.msra.mxu0 0.0
      %544 = vmatprep.subr.mxu0 0.0
      %545 = vmatpush1.msra.mxu0 0.0
      %546 = vmatprep.subr.mxu0 0.0
      %547 = vmatpush1.msra.mxu0 0.0
      %548 = vmatprep.subr.mxu0 0.0
      %549 = vmatpush1.msra.mxu0 0.0
      %550 = vmatprep.subr.mxu0 0.0
      %551 = vmatpush1.msra.mxu0 0.0
      %552 = vmatprep.subr.mxu0 0.0
      %553 = vmatpush1.msra.mxu0 0.0
      %554 = vmatprep.subr.mxu0 0.0
      %555 = vmatpush1.msra.mxu0 0.0
      %556 = vmatprep.subr.mxu0 0.0
      %557 = vmatpush1.msra.mxu0 0.0
      %558 = vmatprep.subr.mxu0 0.0
      %559 = vmatpush1.msra.mxu0 0.0
      %560 = vmatprep.subr.mxu0 0.0
      %561 = vmatpush1.msra.mxu0 0.0
      %562 = vmatprep.subr.mxu0 0.0
      %563 = vmatpush1.msra.mxu0 0.0
      %564 = vmatprep.subr.mxu0 0.0
      %565 = vmatpush1.msra.mxu0 0.0
      %566 = vmatprep.mubr.f32.mxu0 0.0
      %567 = vmatmul.mubr.f32.gmra.mrb[0].mxu0 %v500
      %v568 = vpop.f32.mrb[0].mxu0
      %v569 = vadd.f32 %v495, %v568
      %v570 = vpop.f32.mrb[0].mxu0
      %571 = vdwg.mxu0
      %v572 = vxor.u32 %v569, 2147483648
      %v573 = vmul.f32 %v572, 1.442695
      %v574 = vpow.pop %v573
      %v575 = vadd.f32 %v574, 1.0
      %v576 = vrcp.pop %v575
      %v577 = vmul.f32 1.0, %v576
      %vm578 = vcmask 39936
      %v579 = vsel %vm578, %v569, -inf
      %580 = vmax.xlane.f32.xlu0 %v579
      %v581 = vpop.xlane.xlu0 %580
      %v582 = vsub.f32 %v569, %v581
      %v583 = vmul.f32 %v582, 1.442695
      %v584 = vpow.pop %v583
      %v585 = vsel %vm578, %v584, 0.0
      %586 = vadd.xlane.f32.xlu0 %v585
      %v587 = vpop.xlane.xlu0 %586
      %v588 = vrcp.pop %v587
      %v589 = vmul.f32 %v584, %v588
      %v591 = vsel %vm121, %v112, 0
      %593 = vmatprep.subr.mxu0 0.0
      %594 = vmatpush1.msra.mxu0 %v79
      %595 = vmatprep.subr.mxu0 0.0
      %596 = vmatpush1.msra.mxu0 0.0
      %597 = vmatprep.subr.mxu0 0.0
      %598 = vmatpush1.msra.mxu0 0.0
      %599 = vmatprep.subr.mxu0 0.0
      %600 = vmatpush1.msra.mxu0 0.0
      %601 = vmatprep.subr.mxu0 0.0
      %602 = vmatpush1.msra.mxu0 0.0
      %603 = vmatprep.subr.mxu0 0.0
      %604 = vmatpush1.msra.mxu0 0.0
      %605 = vmatprep.subr.mxu0 0.0
      %606 = vmatpush1.msra.mxu0 0.0
      %607 = vmatprep.subr.mxu0 0.0
      %608 = vmatpush1.msra.mxu0 0.0
      %609 = vmatprep.subr.mxu0 0.0
      %610 = vmatpush1.msra.mxu0 0.0
      %611 = vmatprep.subr.mxu0 0.0
      %612 = vmatpush1.msra.mxu0 0.0
      %613 = vmatprep.subr.mxu0 0.0
      %614 = vmatpush1.msra.mxu0 0.0
      %615 = vmatprep.subr.mxu0 0.0
      %616 = vmatpush1.msra.mxu0 0.0
      %617 = vmatprep.subr.mxu0 0.0
      %618 = vmatpush1.msra.mxu0 0.0
      %619 = vmatprep.subr.mxu0 0.0
      %620 = vmatpush1.msra.mxu0 0.0
      %621 = vmatprep.subr.mxu0 0.0
      %622 = vmatpush1.msra.mxu0 0.0
      %623 = vmatprep.subr.mxu0 0.0
      %624 = vmatpush1.msra.mxu0 0.0
      %625 = vmatprep.subr.mxu0 0.0
      %626 = vmatpush1.msra.mxu0 0.0
      %627 = vmatprep.subr.mxu0 0.0
      %628 = vmatpush1.msra.mxu0 0.0
      %629 = vmatprep.subr.mxu0 0.0
      %630 = vmatpush1.msra.mxu0 0.0
      %631 = vmatprep.subr.mxu0 0.0
      %632 = vmatpush1.msra.mxu0 0.0
      %633 = vmatprep.subr.mxu0 0.0
      %634 = vmatpush1.msra.mxu0 0.0
      %635 = vmatprep.subr.mxu0 0.0
      %636 = vmatpush1.msra.mxu0 0.0
      %637 = vmatprep.subr.mxu0 0.0
      %638 = vmatpush1.msra.mxu0 0.0
      %639 = vmatprep.subr.mxu0 0.0
      %640 = vmatpush1.msra.mxu0 0.0
      %641 = vmatprep.subr.mxu0 0.0
      %642 = vmatpush1.msra.mxu0 0.0
      %643 = vmatprep.subr.mxu0 0.0
      %644 = vmatpush1.msra.mxu0 0.0
      %645 = vmatprep.subr.mxu0 0.0
      %646 = vmatpush1.msra.mxu0 0.0
      %647 = vmatprep.subr.mxu0 0.0
      %648 = vmatpush1.msra.mxu0 0.0
      %649 = vmatprep.subr.mxu0 0.0
      %650 = vmatpush1.msra.mxu0 0.0
      %651 = vmatprep.subr.mxu0 0.0
      %652 = vmatpush1.msra.mxu0 0.0
      %653 = vmatprep.subr.mxu0 0.0
      %654 = vmatpush1.msra.mxu0 0.0
      %655 = vmatprep.subr.mxu0 0.0
      %656 = vmatpush1.msra.mxu0 0.0
      %657 = vmatprep.mubr.f32.mxu0 0.0
      %658 = vmatmul.mubr.f32.gmra.mrb[0].mxu0 %v591
      %v659 = vpop.f32.mrb[0].mxu0
      %v660 = vadd.f32 %v119, %v659
      %v661 = vpop.f32.mrb[0].mxu0
      %662 = vdwg.mxu0
      %663 = vmatprep.subr.mxu0 0.0
      %664 = vmatpush1.msra.mxu0 %v80
      %665 = vmatprep.subr.mxu0 0.0
      %666 = vmatpush1.msra.mxu0 %v81
      %667 = vmatprep.subr.mxu0 0.0
      %668 = vmatpush1.msra.mxu0 %v82
      %669 = vmatprep.subr.mxu0 0.0
      %670 = vmatpush1.msra.mxu0 %v83
      %671 = vmatprep.subr.mxu0 0.0
      %672 = vmatpush1.msra.mxu0 0.0
      %673 = vmatprep.subr.mxu0 0.0
      %674 = vmatpush1.msra.mxu0 0.0
      %675 = vmatprep.subr.mxu0 0.0
      %676 = vmatpush1.msra.mxu0 0.0
      %677 = vmatprep.subr.mxu0 0.0
      %678 = vmatpush1.msra.mxu0 0.0
      %679 = vmatprep.subr.mxu0 0.0
      %680 = vmatpush1.msra.mxu0 0.0
      %681 = vmatprep.subr.mxu0 0.0
      %682 = vmatpush1.msra.mxu0 0.0
      %683 = vmatprep.subr.mxu0 0.0
      %684 = vmatpush1.msra.mxu0 0.0
      %685 = vmatprep.subr.mxu0 0.0
      %686 = vmatpush1.msra.mxu0 0.0
      %687 = vmatprep.subr.mxu0 0.0
      %688 = vmatpush1.msra.mxu0 0.0
      %689 = vmatprep.subr.mxu0 0.0
      %690 = vmatpush1.msra.mxu0 0.0
      %691 = vmatprep.subr.mxu0 0.0
      %692 = vmatpush1.msra.mxu0 0.0
      %693 = vmatprep.subr.mxu0 0.0
      %694 = vmatpush1.msra.mxu0 0.0
      %695 = vmatprep.subr.mxu0 0.0
      %696 = vmatpush1.msra.mxu0 0.0
      %697 = vmatprep.subr.mxu0 0.0
      %698 = vmatpush1.msra.mxu0 0.0
      %699 = vmatprep.subr.mxu0 0.0
      %700 = vmatpush1.msra.mxu0 0.0
      %701 = vmatprep.subr.mxu0 0.0
      %702 = vmatpush1.msra.mxu0 0.0
      %703 = vmatprep.subr.mxu0 0.0
      %704 = vmatpush1.msra.mxu0 0.0
      %705 = vmatprep.subr.mxu0 0.0
      %706 = vmatpush1.msra.mxu0 0.0
      %707 = vmatprep.subr.mxu0 0.0
      %708 = vmatpush1.msra.mxu0 0.0
      %709 = vmatprep.subr.mxu0 0.0
      %710 = vmatpush1.msra.mxu0 0.0
      %711 = vmatprep.subr.mxu0 0.0
      %712 = vmatpush1.msra.mxu0 0.0
      %713 = vmatprep.subr.mxu0 0.0
      %714 = vmatpush1.msra.mxu0 0.0
      %715 = vmatprep.subr.mxu0 0.0
      %716 = vmatpush1.msra.mxu0 0.0
      %717 = vmatprep.subr.mxu0 0.0
      %718 = vmatpush1.msra.mxu0 0.0
      %719 = vmatprep.subr.mxu0 0.0
      %720 = vmatpush1.msra.mxu0 0.0
      %721 = vmatprep.subr.mxu0 0.0
      %722 = vmatpush1.msra.mxu0 0.0
      %723 = vmatprep.subr.mxu0 0.0
      %724 = vmatpush1.msra.mxu0 0.0
      %725 = vmatprep.subr.mxu0 0.0
      %726 = vmatpush1.msra.mxu0 0.0
      %727 = vmatprep.mubr.f32.mxu0 0.0
      %728 = vmatmul.mubr.f32.gmra.mrb[0].mxu0 %v312
      %v729 = vpop.f32.mrb[0].mxu0
      %v730 = vadd.f32 %v199, %v729
      %v731 = vpop.f32.mrb[0].mxu0
      %732 = vdwg.mxu0
      %v733 = vadd.f32 %v660, %v730
      %v734 = vxor.u32 %v733, 2147483648
      %v735 = vmul.f32 %v734, 1.442695
      %v736 = vpow.pop %v735
      %v737 = vadd.f32 %v736, 1.0
      %v738 = vrcp.pop %v737
      %v739 = vmul.f32 1.0, %v738
      %741 = vrot.lane.b32.xlu0 %v730, 64
      %v742 = vpop.permute.xlu0 %741
      %v744 = vmul.f32 %v739, %v742
      %746 = vrot.lane.b32.xlu0 %v744, 64
      %v747 = vpop.permute.xlu0 %746
      %v749 = vadd.f32 %v660, %v747
      %v750 = vtanh.pop %v749
      %v751 = vsub.f32 1.0, %v739
      %753 = vrot.lane.b32.xlu0 %v750, 96
      %v754 = vpop.permute.xlu0 %753
      %v756 = vmul.f32 %v751, %v754
      %v757 = vmul.f32 %v739, %v302
      %v758 = vadd.f32 %v756, %v757
      %760 = vrot.lane.b32.xlu0 %v758, 96
      %v761 = vpop.permute.xlu0 %760
      %v762 = vsel %vm204, %v761, 0
      %764 = vmatprep.subr.mxu0 0.0
      %765 = vmatpush1.msra.mxu0 %v86
      %766 = vmatprep.subr.mxu0 0.0
      %767 = vmatpush1.msra.mxu0 %v87
      %768 = vmatprep.subr.mxu0 0.0
      %769 = vmatpush1.msra.mxu0 %v88
      %770 = vmatprep.subr.mxu0 0.0
      %771 = vmatpush1.msra.mxu0 %v89
      %772 = vmatprep.subr.mxu0 0.0
      %773 = vmatpush1.msra.mxu0 0.0
      %774 = vmatprep.subr.mxu0 0.0
      %775 = vmatpush1.msra.mxu0 0.0
      %776 = vmatprep.subr.mxu0 0.0
      %777 = vmatpush1.msra.mxu0 0.0
      %778 = vmatprep.subr.mxu0 0.0
      %779 = vmatpush1.msra.mxu0 0.0
      %780 = vmatprep.subr.mxu0 0.0
      %781 = vmatpush1.msra.mxu0 0.0
      %782 = vmatprep.subr.mxu0 0.0
      %783 = vmatpush1.msra.mxu0 0.0
      %784 = vmatprep.subr.mxu0 0.0
      %785 = vmatpush1.msra.mxu0 0.0
      %786 = vmatprep.subr.mxu0 0.0
      %787 = vmatpush1.msra.mxu0 0.0
      %788 = vmatprep.subr.mxu0 0.0
      %789 = vmatpush1.msra.mxu0 0.0
      %790 = vmatprep.subr.mxu0 0.0
      %791 = vmatpush1.msra.mxu0 0.0
      %792 = vmatprep.subr.mxu0 0.0
      %793 = vmatpush1.msra.mxu0 0.0
      %794 = vmatprep.subr.mxu0 0.0
      %795 = vmatpush1.msra.mxu0 0.0
      %796 = vmatprep.subr.mxu0 0.0
      %797 = vmatpush1.msra.mxu0 0.0
      %798 = vmatprep.subr.mxu0 0.0
      %799 = vmatpush1.msra.mxu0 0.0
      %800 = vmatprep.subr.mxu0 0.0
      %801 = vmatpush1.msra.mxu0 0.0
      %802 = vmatprep.subr.mxu0 0.0
      %803 = vmatpush1.msra.mxu0 0.0
      %804 = vmatprep.subr.mxu0 0.0
      %805 = vmatpush1.msra.mxu0 0.0
      %806 = vmatprep.subr.mxu0 0.0
      %807 = vmatpush1.msra.mxu0 0.0
      %808 = vmatprep.subr.mxu0 0.0
      %809 = vmatpush1.msra.mxu0 0.0
      %810 = vmatprep.subr.mxu0 0.0
      %811 = vmatpush1.msra.mxu0 0.0
      %812 = vmatprep.subr.mxu0 0.0
      %813 = vmatpush1.msra.mxu0 0.0
      %814 = vmatprep.subr.mxu0 0.0
      %815 = vmatpush1.msra.mxu0 0.0
      %816 = vmatprep.subr.mxu0 0.0
      %817 = vmatpush1.msra.mxu0 0.0
      %818 = vmatprep.subr.mxu0 0.0
      %819 = vmatpush1.msra.mxu0 0.0
      %820 = vmatprep.subr.mxu0 0.0
      %821 = vmatpush1.msra.mxu0 0.0
      %822 = vmatprep.subr.mxu0 0.0
      %823 = vmatpush1.msra.mxu0 0.0
      %824 = vmatprep.subr.mxu0 0.0
      %825 = vmatpush1.msra.mxu0 0.0
      %826 = vmatprep.subr.mxu0 0.0
      %827 = vmatpush1.msra.mxu0 0.0
      %828 = vmatprep.mubr.f32.mxu0 0.0
      %829 = vmatmul.mubr.f32.gmra.mrb[0].mxu0 %v762
      %v830 = vpop.f32.mrb[0].mxu0
      %v831 = vadd.f32 %v307, %v830
      %v832 = vpop.f32.mrb[0].mxu0
      %833 = vdwg.mxu0
      %834 = vmatprep.subr.mxu0 0.0
      %835 = vmatpush1.msra.mxu0 %v90
      %836 = vmatprep.subr.mxu0 0.0
      %837 = vmatpush1.msra.mxu0 %v91
      %838 = vmatprep.subr.mxu0 0.0
      %839 = vmatpush1.msra.mxu0 %v92
      %840 = vmatprep.subr.mxu0 0.0
      %841 = vmatpush1.msra.mxu0 %v93
      %842 = vmatprep.subr.mxu0 0.0
      %843 = vmatpush1.msra.mxu0 0.0
      %844 = vmatprep.subr.mxu0 0.0
      %845 = vmatpush1.msra.mxu0 0.0
      %846 = vmatprep.subr.mxu0 0.0
      %847 = vmatpush1.msra.mxu0 0.0
      %848 = vmatprep.subr.mxu0 0.0
      %849 = vmatpush1.msra.mxu0 0.0
      %850 = vmatprep.subr.mxu0 0.0
      %851 = vmatpush1.msra.mxu0 0.0
      %852 = vmatprep.subr.mxu0 0.0
      %853 = vmatpush1.msra.mxu0 0.0
      %854 = vmatprep.subr.mxu0 0.0
      %855 = vmatpush1.msra.mxu0 0.0
      %856 = vmatprep.subr.mxu0 0.0
      %857 = vmatpush1.msra.mxu0 0.0
      %858 = vmatprep.subr.mxu0 0.0
      %859 = vmatpush1.msra.mxu0 0.0
      %860 = vmatprep.subr.mxu0 0.0
      %861 = vmatpush1.msra.mxu0 0.0
      %862 = vmatprep.subr.mxu0 0.0
      %863 = vmatpush1.msra.mxu0 0.0
      %864 = vmatprep.subr.mxu0 0.0
      %865 = vmatpush1.msra.mxu0 0.0
      %866 = vmatprep.subr.mxu0 0.0
      %867 = vmatpush1.msra.mxu0 0.0
      %868 = vmatprep.subr.mxu0 0.0
      %869 = vmatpush1.msra.mxu0 0.0
      %870 = vmatprep.subr.mxu0 0.0
      %871 = vmatpush1.msra.mxu0 0.0
      %872 = vmatprep.subr.mxu0 0.0
      %873 = vmatpush1.msra.mxu0 0.0
      %874 = vmatprep.subr.mxu0 0.0
      %875 = vmatpush1.msra.mxu0 0.0
      %876 = vmatprep.subr.mxu0 0.0
      %877 = vmatpush1.msra.mxu0 0.0
      %878 = vmatprep.subr.mxu0 0.0
      %879 = vmatpush1.msra.mxu0 0.0
      %880 = vmatprep.subr.mxu0 0.0
      %881 = vmatpush1.msra.mxu0 0.0
      %882 = vmatprep.subr.mxu0 0.0
      %883 = vmatpush1.msra.mxu0 0.0
      %884 = vmatprep.subr.mxu0 0.0
      %885 = vmatpush1.msra.mxu0 0.0
      %886 = vmatprep.subr.mxu0 0.0
      %887 = vmatpush1.msra.mxu0 0.0
      %888 = vmatprep.subr.mxu0 0.0
      %889 = vmatpush1.msra.mxu0 0.0
      %890 = vmatprep.subr.mxu0 0.0
      %891 = vmatpush1.msra.mxu0 0.0
      %892 = vmatprep.subr.mxu0 0.0
      %893 = vmatpush1.msra.mxu0 0.0
      %894 = vmatprep.subr.mxu0 0.0
      %895 = vmatpush1.msra.mxu0 0.0
      %896 = vmatprep.subr.mxu0 0.0
      %897 = vmatpush1.msra.mxu0 0.0
      %898 = vmatprep.mubr.f32.mxu0 0.0
      %899 = vmatmul.mubr.f32.gmra.mrb[0].mxu0 %v500
      %v900 = vpop.f32.mrb[0].mxu0
      %v901 = vadd.f32 %v388, %v900
      %v902 = vpop.f32.mrb[0].mxu0
      %903 = vdwg.mxu0
      %v904 = vadd.f32 %v831, %v901
      %v905 = vxor.u32 %v904, 2147483648
      %v906 = vmul.f32 %v905, 1.442695
      %v907 = vpow.pop %v906
      %v908 = vadd.f32 %v907, 1.0
      %v909 = vrcp.pop %v908
      %v910 = vmul.f32 1.0, %v909
      %912 = vrot.lane.b32.xlu0 %v901, 64
      %v913 = vpop.permute.xlu0 %912
      %v915 = vmul.f32 %v910, %v913
      %917 = vrot.lane.b32.xlu0 %v915, 64
      %v918 = vpop.permute.xlu0 %917
      %v920 = vadd.f32 %v831, %v918
      %v921 = vtanh.pop %v920
      %v922 = vsub.f32 1.0, %v910
      %924 = vrot.lane.b32.xlu0 %v921, 96
      %v925 = vpop.permute.xlu0 %924
      %v927 = vmul.f32 %v922, %v925
      %v928 = vmul.f32 %v910, %v490
      %v929 = vadd.f32 %v927, %v928
      %931 = vrot.lane.b32.xlu0 %v929, 96
      %v932 = vpop.permute.xlu0 %931
      %v933 = vsel %vm204, %v932, 0
      %935 = vmatprep.subr.mxu0 0.0
      %936 = vmatpush1.msra.mxu0 %v96
      %937 = vmatprep.subr.mxu0 0.0
      %938 = vmatpush1.msra.mxu0 %v97
      %939 = vmatprep.subr.mxu0 0.0
      %940 = vmatpush1.msra.mxu0 %v98
      %941 = vmatprep.subr.mxu0 0.0
      %942 = vmatpush1.msra.mxu0 %v99
      %943 = vmatprep.subr.mxu0 0.0
      %944 = vmatpush1.msra.mxu0 0.0
      %945 = vmatprep.subr.mxu0 0.0
      %946 = vmatpush1.msra.mxu0 0.0
      %947 = vmatprep.subr.mxu0 0.0
      %948 = vmatpush1.msra.mxu0 0.0
      %949 = vmatprep.subr.mxu0 0.0
      %950 = vmatpush1.msra.mxu0 0.0
      %951 = vmatprep.subr.mxu0 0.0
      %952 = vmatpush1.msra.mxu0 0.0
      %953 = vmatprep.subr.mxu0 0.0
      %954 = vmatpush1.msra.mxu0 0.0
      %955 = vmatprep.subr.mxu0 0.0
      %956 = vmatpush1.msra.mxu0 0.0
      %957 = vmatprep.subr.mxu0 0.0
      %958 = vmatpush1.msra.mxu0 0.0
      %959 = vmatprep.subr.mxu0 0.0
      %960 = vmatpush1.msra.mxu0 0.0
      %961 = vmatprep.subr.mxu0 0.0
      %962 = vmatpush1.msra.mxu0 0.0
      %963 = vmatprep.subr.mxu0 0.0
      %964 = vmatpush1.msra.mxu0 0.0
      %965 = vmatprep.subr.mxu0 0.0
      %966 = vmatpush1.msra.mxu0 0.0
      %967 = vmatprep.subr.mxu0 0.0
      %968 = vmatpush1.msra.mxu0 0.0
      %969 = vmatprep.subr.mxu0 0.0
      %970 = vmatpush1.msra.mxu0 0.0
      %971 = vmatprep.subr.mxu0 0.0
      %972 = vmatpush1.msra.mxu0 0.0
      %973 = vmatprep.subr.mxu0 0.0
      %974 = vmatpush1.msra.mxu0 0.0
      %975 = vmatprep.subr.mxu0 0.0
      %976 = vmatpush1.msra.mxu0 0.0
      %977 = vmatprep.subr.mxu0 0.0
      %978 = vmatpush1.msra.mxu0 0.0
      %979 = vmatprep.subr.mxu0 0.0
      %980 = vmatpush1.msra.mxu0 0.0
      %981 = vmatprep.subr.mxu0 0.0
      %982 = vmatpush1.msra.mxu0 0.0
      %983 = vmatprep.subr.mxu0 0.0
      %984 = vmatpush1.msra.mxu0 0.0
      %985 = vmatprep.subr.mxu0 0.0
      %986 = vmatpush1.msra.mxu0 0.0
      %987 = vmatprep.subr.mxu0 0.0
      %988 = vmatpush1.msra.mxu0 0.0
      %989 = vmatprep.subr.mxu0 0.0
      %990 = vmatpush1.msra.mxu0 0.0
      %991 = vmatprep.subr.mxu0 0.0
      %992 = vmatpush1.msra.mxu0 0.0
      %993 = vmatprep.subr.mxu0 0.0
      %994 = vmatpush1.msra.mxu0 0.0
      %995 = vmatprep.subr.mxu0 0.0
      %996 = vmatpush1.msra.mxu0 0.0
      %997 = vmatprep.subr.mxu0 0.0
      %998 = vmatpush1.msra.mxu0 0.0
      %999 = vmatprep.mubr.f32.mxu0 0.0
      %1000 = vmatmul.mubr.f32.gmra.mrb[0].mxu0 %v933
      %v1001 = vpop.f32.mrb[0].mxu0
      %v1002 = vadd.f32 %v495, %v1001
      %v1003 = vpop.f32.mrb[0].mxu0
      %1004 = vdwg.mxu0
      %v1005 = vxor.u32 %v1002, 2147483648
      %v1006 = vmul.f32 %v1005, 1.442695
      %v1007 = vpow.pop %v1006
      %v1008 = vadd.f32 %v1007, 1.0
      %v1009 = vrcp.pop %v1008
      %v1010 = vmul.f32 1.0, %v1009
      %v1011 = vsel %vm578, %v1002, -inf
      %1012 = vmax.xlane.f32.xlu0 %v1011
      %v1013 = vpop.xlane.xlu0 %1012
      %v1014 = vsub.f32 %v1002, %v1013
      %v1015 = vmul.f32 %v1014, 1.442695
      %v1016 = vpow.pop %v1015
      %v1017 = vsel %vm578, %v1016, 0.0
      %1018 = vadd.xlane.f32.xlu0 %v1017
      %v1019 = vpop.xlane.xlu0 %1018
      %v1020 = vrcp.pop %v1019
      %v1021 = vmul.f32 %v1016, %v1020
      %1023 = vset.pattern.permute.xlu0 5
      %1024 = vperm.xlu0 %1023, %v577
      %v1025 = vpop.permute.xlu0 %1024
      %v1027 = vmul.f32 %v1021, %v1025
      %v1028 = vsub.f32 1.0, %v577
      %1030 = vset.pattern.permute.xlu0 5
      %1031 = vperm.xlu0 %1030, %v1028
      %v1032 = vpop.permute.xlu0 %1031
      %v1034 = vmul.f32 %v589, %v1032
      %v1035 = vadd.f32 %v1027, %v1034
      %v1036 = vmul.f32 %v577, %v1010
      %1038 = vset.pattern.permute.xlu0 5
      %1039 = vperm.xlu0 %1038, %v1036
      %v1040 = vpop.permute.xlu0 %1039
      %v1042 = vmul.f32 %v758, %v1040
      %v1043 = vsub.f32 1.0, %v1036
      %1045 = vset.pattern.permute.xlu0 5
      %1046 = vperm.xlu0 %1045, %v1043
      %v1047 = vpop.permute.xlu0 %1046
      %v1049 = vmul.f32 %v302, %v1047
      %v1050 = vadd.f32 %v1042, %v1049
      %v1051 = vmul.f32 %v929, %v1040
      %v1052 = vmul.f32 %v490, %v1047
      %v1053 = vadd.f32 %v1051, %v1052
      %v1055 = vsel %vm121, %v113, 0
      %1057 = vmatprep.subr.mxu0 0.0
      %1058 = vmatpush1.msra.mxu0 %v79
      %1059 = vmatprep.subr.mxu0 0.0
      %1060 = vmatpush1.msra.mxu0 0.0
      %1061 = vmatprep.subr.mxu0 0.0
      %1062 = vmatpush1.msra.mxu0 0.0
      %1063 = vmatprep.subr.mxu0 0.0
      %1064 = vmatpush1.msra.mxu0 0.0
      %1065 = vmatprep.subr.mxu0 0.0
      %1066 = vmatpush1.msra.mxu0 0.0
      %1067 = vmatprep.subr.mxu0 0.0
      %1068 = vmatpush1.msra.mxu0 0.0
      %1069 = vmatprep.subr.mxu0 0.0
      %1070 = vmatpush1.msra.mxu0 0.0
      %1071 = vmatprep.subr.mxu0 0.0
      %1072 = vmatpush1.msra.mxu0 0.0
      %1073 = vmatprep.subr.mxu0 0.0
      %1074 = vmatpush1.msra.mxu0 0.0
      %1075 = vmatprep.subr.mxu0 0.0
      %1076 = vmatpush1.msra.mxu0 0.0
      %1077 = vmatprep.subr.mxu0 0.0
      %1078 = vmatpush1.msra.mxu0 0.0
      %1079 = vmatprep.subr.mxu0 0.0
      %1080 = vmatpush1.msra.mxu0 0.0
      %1081 = vmatprep.subr.mxu0 0.0
      %1082 = vmatpush1.msra.mxu0 0.0
      %1083 = vmatprep.subr.mxu0 0.0
      %1084 = vmatpush1.msra.mxu0 0.0
      %1085 = vmatprep.subr.mxu0 0.0
      %1086 = vmatpush1.msra.mxu0 0.0
      %1087 = vmatprep.subr.mxu0 0.0
      %1088 = vmatpush1.msra.mxu0 0.0
      %1089 = vmatprep.subr.mxu0 0.0
      %1090 = vmatpush1.msra.mxu0 0.0
      %1091 = vmatprep.subr.mxu0 0.0
      %1092 = vmatpush1.msra.mxu0 0.0
      %1093 = vmatprep.subr.mxu0 0.0
      %1094 = vmatpush1.msra.mxu0 0.0
      %1095 = vmatprep.subr.mxu0 0.0
      %1096 = vmatpush1.msra.mxu0 0.0
      %1097 = vmatprep.subr.mxu0 0.0
      %1098 = vmatpush1.msra.mxu0 0.0
      %1099 = vmatprep.subr.mxu0 0.0
      %1100 = vmatpush1.msra.mxu0 0.0
      %1101 = vmatprep.subr.mxu0 0.0
      %1102 = vmatpush1.msra.mxu0 0.0
      %1103 = vmatprep.subr.mxu0 0.0
      %1104 = vmatpush1.msra.mxu0 0.0
      %1105 = vmatprep.subr.mxu0 0.0
      %1106 = vmatpush1.msra.mxu0 0.0
      %1107 = vmatprep.subr.mxu0 0.0
      %1108 = vmatpush1.msra.mxu0 0.0
      %1109 = vmatprep.subr.mxu0 0.0
      %1110 = vmatpush1.msra.mxu0 0.0
      %1111 = vmatprep.subr.mxu0 0.0
      %1112 = vmatpush1.msra.mxu0 0.0
      %1113 = vmatprep.subr.mxu0 0.0
      %1114 = vmatpush1.msra.mxu0 0.0
      %1115 = vmatprep.subr.mxu0 0.0
      %1116 = vmatpush1.msra.mxu0 0.0
      %1117 = vmatprep.subr.mxu0 0.0
      %1118 = vmatpush1.msra.mxu0 0.0
      %1119 = vmatprep.subr.mxu0 0.0
      %1120 = vmatpush1.msra.mxu0 0.0
      %1121 = vmatprep.mubr.f32.mxu0 0.0
      %1122 = vmatmul.mubr.f32.gmra.mrb[0].mxu0 %v1055
      %v1123 = vpop.f32.mrb[0].mxu0
      %v1124 = vadd.f32 %v119, %v1123
      %v1125 = vpop.f32.mrb[0].mxu0
      %1126 = vdwg.mxu0
      %1127 = vmatprep.subr.mxu0 0.0
      %1128 = vmatpush1.msra.mxu0 %v80
      %1129 = vmatprep.subr.mxu0 0.0
      %1130 = vmatpush1.msra.mxu0 %v81
      %1131 = vmatprep.subr.mxu0 0.0
      %1132 = vmatpush1.msra.mxu0 %v82
      %1133 = vmatprep.subr.mxu0 0.0
      %1134 = vmatpush1.msra.mxu0 %v83
      %1135 = vmatprep.subr.mxu0 0.0
      %1136 = vmatpush1.msra.mxu0 0.0
      %1137 = vmatprep.subr.mxu0 0.0
      %1138 = vmatpush1.msra.mxu0 0.0
      %1139 = vmatprep.subr.mxu0 0.0
      %1140 = vmatpush1.msra.mxu0 0.0
      %1141 = vmatprep.subr.mxu0 0.0
      %1142 = vmatpush1.msra.mxu0 0.0
      %1143 = vmatprep.subr.mxu0 0.0
      %1144 = vmatpush1.msra.mxu0 0.0
      %1145 = vmatprep.subr.mxu0 0.0
      %1146 = vmatpush1.msra.mxu0 0.0
      %1147 = vmatprep.subr.mxu0 0.0
      %1148 = vmatpush1.msra.mxu0 0.0
      %1149 = vmatprep.subr.mxu0 0.0
      %1150 = vmatpush1.msra.mxu0 0.0
      %1151 = vmatprep.subr.mxu0 0.0
      %1152 = vmatpush1.msra.mxu0 0.0
      %1153 = vmatprep.subr.mxu0 0.0
      %1154 = vmatpush1.msra.mxu0 0.0
      %1155 = vmatprep.subr.mxu0 0.0
      %1156 = vmatpush1.msra.mxu0 0.0
      %1157 = vmatprep.subr.mxu0 0.0
      %1158 = vmatpush1.msra.mxu0 0.0
      %1159 = vmatprep.subr.mxu0 0.0
      %1160 = vmatpush1.msra.mxu0 0.0
      %1161 = vmatprep.subr.mxu0 0.0
      %1162 = vmatpush1.msra.mxu0 0.0
      %1163 = vmatprep.subr.mxu0 0.0
      %1164 = vmatpush1.msra.mxu0 0.0
      %1165 = vmatprep.subr.mxu0 0.0
      %1166 = vmatpush1.msra.mxu0 0.0
      %1167 = vmatprep.subr.mxu0 0.0
      %1168 = vmatpush1.msra.mxu0 0.0
      %1169 = vmatprep.subr.mxu0 0.0
      %1170 = vmatpush1.msra.mxu0 0.0
      %1171 = vmatprep.subr.mxu0 0.0
      %1172 = vmatpush1.msra.mxu0 0.0
      %1173 = vmatprep.subr.mxu0 0.0
      %1174 = vmatpush1.msra.mxu0 0.0
      %1175 = vmatprep.subr.mxu0 0.0
      %1176 = vmatpush1.msra.mxu0 0.0
      %1177 = vmatprep.subr.mxu0 0.0
      %1178 = vmatpush1.msra.mxu0 0.0
      %1179 = vmatprep.subr.mxu0 0.0
      %1180 = vmatpush1.msra.mxu0 0.0
      %1181 = vmatprep.subr.mxu0 0.0
      %1182 = vmatpush1.msra.mxu0 0.0
      %1183 = vmatprep.subr.mxu0 0.0
      %1184 = vmatpush1.msra.mxu0 0.0
      %1185 = vmatprep.subr.mxu0 0.0
      %1186 = vmatpush1.msra.mxu0 0.0
      %1187 = vmatprep.subr.mxu0 0.0
      %1188 = vmatpush1.msra.mxu0 0.0
      %1189 = vmatprep.subr.mxu0 0.0
      %1190 = vmatpush1.msra.mxu0 0.0
      %1191 = vmatprep.mubr.f32.mxu0 0.0
      %1192 = vmatmul.mubr.f32.gmra.mrb[0].mxu0 %v762
      %v1193 = vpop.f32.mrb[0].mxu0
      %v1194 = vadd.f32 %v199, %v1193
      %v1195 = vpop.f32.mrb[0].mxu0
      %1196 = vdwg.mxu0
      %v1197 = vadd.f32 %v1124, %v1194
      %v1198 = vxor.u32 %v1197, 2147483648
      %v1199 = vmul.f32 %v1198, 1.442695
      %v1200 = vpow.pop %v1199
      %v1201 = vadd.f32 %v1200, 1.0
      %v1202 = vrcp.pop %v1201
      %v1203 = vmul.f32 1.0, %v1202
      %1205 = vrot.lane.b32.xlu0 %v1194, 64
      %v1206 = vpop.permute.xlu0 %1205
      %v1208 = vmul.f32 %v1203, %v1206
      %1210 = vrot.lane.b32.xlu0 %v1208, 64
      %v1211 = vpop.permute.xlu0 %1210
      %v1213 = vadd.f32 %v1124, %v1211
      %v1214 = vtanh.pop %v1213
      %v1215 = vsub.f32 1.0, %v1203
      %1217 = vrot.lane.b32.xlu0 %v1214, 96
      %v1218 = vpop.permute.xlu0 %1217
      %v1220 = vmul.f32 %v1215, %v1218
      %v1221 = vmul.f32 %v1203, %v758
      %v1222 = vadd.f32 %v1220, %v1221
      %1224 = vrot.lane.b32.xlu0 %v1222, 96
      %v1225 = vpop.permute.xlu0 %1224
      %v1226 = vsel %vm204, %v1225, 0
      %1228 = vmatprep.subr.mxu0 0.0
      %1229 = vmatpush1.msra.mxu0 %v86
      %1230 = vmatprep.subr.mxu0 0.0
      %1231 = vmatpush1.msra.mxu0 %v87
      %1232 = vmatprep.subr.mxu0 0.0
      %1233 = vmatpush1.msra.mxu0 %v88
      %1234 = vmatprep.subr.mxu0 0.0
      %1235 = vmatpush1.msra.mxu0 %v89
      %1236 = vmatprep.subr.mxu0 0.0
      %1237 = vmatpush1.msra.mxu0 0.0
      %1238 = vmatprep.subr.mxu0 0.0
      %1239 = vmatpush1.msra.mxu0 0.0
      %1240 = vmatprep.subr.mxu0 0.0
      %1241 = vmatpush1.msra.mxu0 0.0
      %1242 = vmatprep.subr.mxu0 0.0
      %1243 = vmatpush1.msra.mxu0 0.0
      %1244 = vmatprep.subr.mxu0 0.0
      %1245 = vmatpush1.msra.mxu0 0.0
      %1246 = vmatprep.subr.mxu0 0.0
      %1247 = vmatpush1.msra.mxu0 0.0
      %1248 = vmatprep.subr.mxu0 0.0
      %1249 = vmatpush1.msra.mxu0 0.0
      %1250 = vmatprep.subr.mxu0 0.0
      %1251 = vmatpush1.msra.mxu0 0.0
      %1252 = vmatprep.subr.mxu0 0.0
      %1253 = vmatpush1.msra.mxu0 0.0
      %1254 = vmatprep.subr.mxu0 0.0
      %1255 = vmatpush1.msra.mxu0 0.0
      %1256 = vmatprep.subr.mxu0 0.0
      %1257 = vmatpush1.msra.mxu0 0.0
      %1258 = vmatprep.subr.mxu0 0.0
      %1259 = vmatpush1.msra.mxu0 0.0
      %1260 = vmatprep.subr.mxu0 0.0
      %1261 = vmatpush1.msra.mxu0 0.0
      %1262 = vmatprep.subr.mxu0 0.0
      %1263 = vmatpush1.msra.mxu0 0.0
      %1264 = vmatprep.subr.mxu0 0.0
      %1265 = vmatpush1.msra.mxu0 0.0
      %1266 = vmatprep.subr.mxu0 0.0
      %1267 = vmatpush1.msra.mxu0 0.0
      %1268 = vmatprep.subr.mxu0 0.0
      %1269 = vmatpush1.msra.mxu0 0.0
      %1270 = vmatprep.subr.mxu0 0.0
      %1271 = vmatpush1.msra.mxu0 0.0
      %1272 = vmatprep.subr.mxu0 0.0
      %1273 = vmatpush1.msra.mxu0 0.0
      %1274 = vmatprep.subr.mxu0 0.0
      %1275 = vmatpush1.msra.mxu0 0.0
      %1276 = vmatprep.subr.mxu0 0.0
      %1277 = vmatpush1.msra.mxu0 0.0
      %1278 = vmatprep.subr.mxu0 0.0
      %1279 = vmatpush1.msra.mxu0 0.0
      %1280 = vmatprep.subr.mxu0 0.0
      %1281 = vmatpush1.msra.mxu0 0.0
      %1282 = vmatprep.subr.mxu0 0.0
      %1283 = vmatpush1.msra.mxu0 0.0
      %1284 = vmatprep.subr.mxu0 0.0
      %1285 = vmatpush1.msra.mxu0 0.0
      %1286 = vmatprep.subr.mxu0 0.0
      %1287 = vmatpush1.msra.mxu0 0.0
      %1288 = vmatprep.subr.mxu0 0.0
      %1289 = vmatpush1.msra.mxu0 0.0
      %1290 = vmatprep.subr.mxu0 0.0
      %1291 = vmatpush1.msra.mxu0 0.0
      %1292 = vmatprep.mubr.f32.mxu0 0.0
      %1293 = vmatmul.mubr.f32.gmra.mrb[0].mxu0 %v1226
      %v1294 = vpop.f32.mrb[0].mxu0
      %v1295 = vadd.f32 %v307, %v1294
      %v1296 = vpop.f32.mrb[0].mxu0
      %1297 = vdwg.mxu0
      %1298 = vmatprep.subr.mxu0 0.0
      %1299 = vmatpush1.msra.mxu0 %v90
      %1300 = vmatprep.subr.mxu0 0.0
      %1301 = vmatpush1.msra.mxu0 %v91
      %1302 = vmatprep.subr.mxu0 0.0
      %1303 = vmatpush1.msra.mxu0 %v92
      %1304 = vmatprep.subr.mxu0 0.0
      %1305 = vmatpush1.msra.mxu0 %v93
      %1306 = vmatprep.subr.mxu0 0.0
      %1307 = vmatpush1.msra.mxu0 0.0
      %1308 = vmatprep.subr.mxu0 0.0
      %1309 = vmatpush1.msra.mxu0 0.0
      %1310 = vmatprep.subr.mxu0 0.0
      %1311 = vmatpush1.msra.mxu0 0.0
      %1312 = vmatprep.subr.mxu0 0.0
      %1313 = vmatpush1.msra.mxu0 0.0
      %1314 = vmatprep.subr.mxu0 0.0
      %1315 = vmatpush1.msra.mxu0 0.0
      %1316 = vmatprep.subr.mxu0 0.0
      %1317 = vmatpush1.msra.mxu0 0.0
      %1318 = vmatprep.subr.mxu0 0.0
      %1319 = vmatpush1.msra.mxu0 0.0
      %1320 = vmatprep.subr.mxu0 0.0
      %1321 = vmatpush1.msra.mxu0 0.0
      %1322 = vmatprep.subr.mxu0 0.0
      %1323 = vmatpush1.msra.mxu0 0.0
      %1324 = vmatprep.subr.mxu0 0.0
      %1325 = vmatpush1.msra.mxu0 0.0
      %1326 = vmatprep.subr.mxu0 0.0
      %1327 = vmatpush1.msra.mxu0 0.0
      %1328 = vmatprep.subr.mxu0 0.0
      %1329 = vmatpush1.msra.mxu0 0.0
      %1330 = vmatprep.subr.mxu0 0.0
      %1331 = vmatpush1.msra.mxu0 0.0
      %1332 = vmatprep.subr.mxu0 0.0
      %1333 = vmatpush1.msra.mxu0 0.0
      %1334 = vmatprep.subr.mxu0 0.0
      %1335 = vmatpush1.msra.mxu0 0.0
      %1336 = vmatprep.subr.mxu0 0.0
      %1337 = vmatpush1.msra.mxu0 0.0
      %1338 = vmatprep.subr.mxu0 0.0
      %1339 = vmatpush1.msra.mxu0 0.0
      %1340 = vmatprep.subr.mxu0 0.0
      %1341 = vmatpush1.msra.mxu0 0.0
      %1342 = vmatprep.subr.mxu0 0.0
      %1343 = vmatpush1.msra.mxu0 0.0
      %1344 = vmatprep.subr.mxu0 0.0
      %1345 = vmatpush1.msra.mxu0 0.0
      %1346 = vmatprep.subr.mxu0 0.0
      %1347 = vmatpush1.msra.mxu0 0.0
      %1348 = vmatprep.subr.mxu0 0.0
      %1349 = vmatpush1.msra.mxu0 0.0
      %1350 = vmatprep.subr.mxu0 0.0
      %1351 = vmatpush1.msra.mxu0 0.0
      %1352 = vmatprep.subr.mxu0 0.0
      %1353 = vmatpush1.msra.mxu0 0.0
      %1354 = vmatprep.subr.mxu0 0.0
      %1355 = vmatpush1.msra.mxu0 0.0
      %1356 = vmatprep.subr.mxu0 0.0
      %1357 = vmatpush1.msra.mxu0 0.0
      %1358 = vmatprep.subr.mxu0 0.0
      %1359 = vmatpush1.msra.mxu0 0.0
      %1360 = vmatprep.subr.mxu0 0.0
      %1361 = vmatpush1.msra.mxu0 0.0
      %1362 = vmatprep.mubr.f32.mxu0 0.0
      %1363 = vmatmul.mubr.f32.gmra.mrb[0].mxu0 %v933
      %v1364 = vpop.f32.mrb[0].mxu0
      %v1365 = vadd.f32 %v388, %v1364
      %v1366 = vpop.f32.mrb[0].mxu0
      %1367 = vdwg.mxu0
      %v1368 = vadd.f32 %v1295, %v1365
      %v1369 = vxor.u32 %v1368, 2147483648
      %v1370 = vmul.f32 %v1369, 1.442695
      %v1371 = vpow.pop %v1370
      %v1372 = vadd.f32 %v1371, 1.0
      %v1373 = vrcp.pop %v1372
      %v1374 = vmul.f32 1.0, %v1373
      %1376 = vrot.lane.b32.xlu0 %v1365, 64
      %v1377 = vpop.permute.xlu0 %1376
      %v1379 = vmul.f32 %v1374, %v1377
      %1381 = vrot.lane.b32.xlu0 %v1379, 64
      %v1382 = vpop.permute.xlu0 %1381
      %v1384 = vadd.f32 %v1295, %v1382
      %v1385 = vtanh.pop %v1384
      %v1386 = vsub.f32 1.0, %v1374
      %1388 = vrot.lane.b32.xlu0 %v1385, 96
      %v1389 = vpop.permute.xlu0 %1388
      %v1391 = vmul.f32 %v1386, %v1389
      %v1392 = vmul.f32 %v1374, %v929
      %v1393 = vadd.f32 %v1391, %v1392
      %1395 = vrot.lane.b32.xlu0 %v1393, 96
      %v1396 = vpop.permute.xlu0 %1395
      %v1397 = vsel %vm204, %v1396, 0
      %1399 = vmatprep.subr.mxu0 0.0
      %1400 = vmatpush1.msra.mxu0 %v96
      %1401 = vmatprep.subr.mxu0 0.0
      %1402 = vmatpush1.msra.mxu0 %v97
      %1403 = vmatprep.subr.mxu0 0.0
      %1404 = vmatpush1.msra.mxu0 %v98
      %1405 = vmatprep.subr.mxu0 0.0
      %1406 = vmatpush1.msra.mxu0 %v99
      %1407 = vmatprep.subr.mxu0 0.0
      %1408 = vmatpush1.msra.mxu0 0.0
      %1409 = vmatprep.subr.mxu0 0.0
      %1410 = vmatpush1.msra.mxu0 0.0
      %1411 = vmatprep.subr.mxu0 0.0
      %1412 = vmatpush1.msra.mxu0 0.0
      %1413 = vmatprep.subr.mxu0 0.0
      %1414 = vmatpush1.msra.mxu0 0.0
      %1415 = vmatprep.subr.mxu0 0.0
      %1416 = vmatpush1.msra.mxu0 0.0
      %1417 = vmatprep.subr.mxu0 0.0
      %1418 = vmatpush1.msra.mxu0 0.0
      %1419 = vmatprep.subr.mxu0 0.0
      %1420 = vmatpush1.msra.mxu0 0.0
      %1421 = vmatprep.subr.mxu0 0.0
      %1422 = vmatpush1.msra.mxu0 0.0
      %1423 = vmatprep.subr.mxu0 0.0
      %1424 = vmatpush1.msra.mxu0 0.0
      %1425 = vmatprep.subr.mxu0 0.0
      %1426 = vmatpush1.msra.mxu0 0.0
      %1427 = vmatprep.subr.mxu0 0.0
      %1428 = vmatpush1.msra.mxu0 0.0
      %1429 = vmatprep.subr.mxu0 0.0
      %1430 = vmatpush1.msra.mxu0 0.0
      %1431 = vmatprep.subr.mxu0 0.0
      %1432 = vmatpush1.msra.mxu0 0.0
      %1433 = vmatprep.subr.mxu0 0.0
      %1434 = vmatpush1.msra.mxu0 0.0
      %1435 = vmatprep.subr.mxu0 0.0
      %1436 = vmatpush1.msra.mxu0 0.0
      %1437 = vmatprep.subr.mxu0 0.0
      %1438 = vmatpush1.msra.mxu0 0.0
      %1439 = vmatprep.subr.mxu0 0.0
      %1440 = vmatpush1.msra.mxu0 0.0
      %1441 = vmatprep.subr.mxu0 0.0
      %1442 = vmatpush1.msra.mxu0 0.0
      %1443 = vmatprep.subr.mxu0 0.0
      %1444 = vmatpush1.msra.mxu0 0.0
      %1445 = vmatprep.subr.mxu0 0.0
      %1446 = vmatpush1.msra.mxu0 0.0
      %1447 = vmatprep.subr.mxu0 0.0
      %1448 = vmatpush1.msra.mxu0 0.0
      %1449 = vmatprep.subr.mxu0 0.0
      %1450 = vmatpush1.msra.mxu0 0.0
      %1451 = vmatprep.subr.mxu0 0.0
      %1452 = vmatpush1.msra.mxu0 0.0
      %1453 = vmatprep.subr.mxu0 0.0
      %1454 = vmatpush1.msra.mxu0 0.0
      %1455 = vmatprep.subr.mxu0 0.0
      %1456 = vmatpush1.msra.mxu0 0.0
      %1457 = vmatprep.subr.mxu0 0.0
      %1458 = vmatpush1.msra.mxu0 0.0
      %1459 = vmatprep.subr.mxu0 0.0
      %1460 = vmatpush1.msra.mxu0 0.0
      %1461 = vmatprep.subr.mxu0 0.0
      %1462 = vmatpush1.msra.mxu0 0.0
      %1463 = vmatprep.mubr.f32.mxu0 0.0
      %1464 = vmatmul.mubr.f32.gmra.mrb[0].mxu0 %v1397
      %v1465 = vpop.f32.mrb[0].mxu0
      %v1466 = vadd.f32 %v495, %v1465
      %v1467 = vpop.f32.mrb[0].mxu0
      %1468 = vdwg.mxu0
      %v1469 = vxor.u32 %v1466, 2147483648
      %v1470 = vmul.f32 %v1469, 1.442695
      %v1471 = vpow.pop %v1470
      %v1472 = vadd.f32 %v1471, 1.0
      %v1473 = vrcp.pop %v1472
      %v1474 = vmul.f32 1.0, %v1473
      %v1475 = vsel %vm578, %v1466, -inf
      %1476 = vmax.xlane.f32.xlu0 %v1475
      %v1477 = vpop.xlane.xlu0 %1476
      %v1478 = vsub.f32 %v1466, %v1477
      %v1479 = vmul.f32 %v1478, 1.442695
      %v1480 = vpow.pop %v1479
      %v1481 = vsel %vm578, %v1480, 0.0
      %1482 = vadd.xlane.f32.xlu0 %v1481
      %v1483 = vpop.xlane.xlu0 %1482
      %v1484 = vrcp.pop %v1483
      %v1485 = vmul.f32 %v1480, %v1484
      %v1486 = vmul.f32 %v1485, %v1040
      %v1487 = vmul.f32 %v1035, %v1047
      %v1488 = vadd.f32 %v1486, %v1487
      %v1489 = vmul.f32 %v1036, %v1474
      %1491 = vset.pattern.permute.xlu0 5
      %1492 = vperm.xlu0 %1491, %v1489
      %v1493 = vpop.permute.xlu0 %1492
      %v1495 = vmul.f32 %v1222, %v1493
      %v1496 = vsub.f32 1.0, %v1489
      %1498 = vset.pattern.permute.xlu0 5
      %1499 = vperm.xlu0 %1498, %v1496
      %v1500 = vpop.permute.xlu0 %1499
      %v1502 = vmul.f32 %v1050, %v1500
      %v1503 = vadd.f32 %v1495, %v1502
      %v1504 = vmul.f32 %v1393, %v1493
      %v1505 = vmul.f32 %v1053, %v1500
      %v1506 = vadd.f32 %v1504, %v1505
      %v1508 = vsel %vm121, %v114, 0
      %1510 = vmatprep.subr.mxu0 0.0
      %1511 = vmatpush1.msra.mxu0 %v79
      %1512 = vmatprep.subr.mxu0 0.0
      %1513 = vmatpush1.msra.mxu0 0.0
      %1514 = vmatprep.subr.mxu0 0.0
      %1515 = vmatpush1.msra.mxu0 0.0
      %1516 = vmatprep.subr.mxu0 0.0
      %1517 = vmatpush1.msra.mxu0 0.0
      %1518 = vmatprep.subr.mxu0 0.0
      %1519 = vmatpush1.msra.mxu0 0.0
      %1520 = vmatprep.subr.mxu0 0.0
      %1521 = vmatpush1.msra.mxu0 0.0
      %1522 = vmatprep.subr.mxu0 0.0
      %1523 = vmatpush1.msra.mxu0 0.0
      %1524 = vmatprep.subr.mxu0 0.0
      %1525 = vmatpush1.msra.mxu0 0.0
      %1526 = vmatprep.subr.mxu0 0.0
      %1527 = vmatpush1.msra.mxu0 0.0
      %1528 = vmatprep.subr.mxu0 0.0
      %1529 = vmatpush1.msra.mxu0 0.0
      %1530 = vmatprep.subr.mxu0 0.0
      %1531 = vmatpush1.msra.mxu0 0.0
      %1532 = vmatprep.subr.mxu0 0.0
      %1533 = vmatpush1.msra.mxu0 0.0
      %1534 = vmatprep.subr.mxu0 0.0
      %1535 = vmatpush1.msra.mxu0 0.0
      %1536 = vmatprep.subr.mxu0 0.0
      %1537 = vmatpush1.msra.mxu0 0.0
      %1538 = vmatprep.subr.mxu0 0.0
      %1539 = vmatpush1.msra.mxu0 0.0
      %1540 = vmatprep.subr.mxu0 0.0
      %1541 = vmatpush1.msra.mxu0 0.0
      %1542 = vmatprep.subr.mxu0 0.0
      %1543 = vmatpush1.msra.mxu0 0.0
      %1544 = vmatprep.subr.mxu0 0.0
      %1545 = vmatpush1.msra.mxu0 0.0
      %1546 = vmatprep.subr.mxu0 0.0
      %1547 = vmatpush1.msra.mxu0 0.0
      %1548 = vmatprep.subr.mxu0 0.0
      %1549 = vmatpush1.msra.mxu0 0.0
      %1550 = vmatprep.subr.mxu0 0.0
      %1551 = vmatpush1.msra.mxu0 0.0
      %1552 = vmatprep.subr.mxu0 0.0
      %1553 = vmatpush1.msra.mxu0 0.0
      %1554 = vmatprep.subr.mxu0 0.0
      %1555 = vmatpush1.msra.mxu0 0.0
      %1556 = vmatprep.subr.mxu0 0.0
      %1557 = vmatpush1.msra.mxu0 0.0
      %1558 = vmatprep.subr.mxu0 0.0
      %1559 = vmatpush1.msra.mxu0 0.0
      %1560 = vmatprep.subr.mxu0 0.0
      %1561 = vmatpush1.msra.mxu0 0.0
      %1562 = vmatprep.subr.mxu0 0.0
      %1563 = vmatpush1.msra.mxu0 0.0
      %1564 = vmatprep.subr.mxu0 0.0
      %1565 = vmatpush1.msra.mxu0 0.0
      %1566 = vmatprep.subr.mxu0 0.0
      %1567 = vmatpush1.msra.mxu0 0.0
      %1568 = vmatprep.subr.mxu0 0.0
      %1569 = vmatpush1.msra.mxu0 0.0
      %1570 = vmatprep.subr.mxu0 0.0
      %1571 = vmatpush1.msra.mxu0 0.0
      %1572 = vmatprep.subr.mxu0 0.0
      %1573 = vmatpush1.msra.mxu0 0.0
      %1574 = vmatprep.mubr.f32.mxu0 0.0
      %1575 = vmatmul.mubr.f32.gmra.mrb[0].mxu0 %v1508
      %v1576 = vpop.f32.mrb[0].mxu0
      %v1577 = vadd.f32 %v119, %v1576
      %v1578 = vpop.f32.mrb[0].mxu0
      %1579 = vdwg.mxu0
      %1580 = vmatprep.subr.mxu0 0.0
      %1581 = vmatpush1.msra.mxu0 %v80
      %1582 = vmatprep.subr.mxu0 0.0
      %1583 = vmatpush1.msra.mxu0 %v81
      %1584 = vmatprep.subr.mxu0 0.0
      %1585 = vmatpush1.msra.mxu0 %v82
      %1586 = vmatprep.subr.mxu0 0.0
      %1587 = vmatpush1.msra.mxu0 %v83
      %1588 = vmatprep.subr.mxu0 0.0
      %1589 = vmatpush1.msra.mxu0 0.0
      %1590 = vmatprep.subr.mxu0 0.0
      %1591 = vmatpush1.msra.mxu0 0.0
      %1592 = vmatprep.subr.mxu0 0.0
      %1593 = vmatpush1.msra.mxu0 0.0
      %1594 = vmatprep.subr.mxu0 0.0
      %1595 = vmatpush1.msra.mxu0 0.0
      %1596 = vmatprep.subr.mxu0 0.0
      %1597 = vmatpush1.msra.mxu0 0.0
      %1598 = vmatprep.subr.mxu0 0.0
      %1599 = vmatpush1.msra.mxu0 0.0
      %1600 = vmatprep.subr.mxu0 0.0
      %1601 = vmatpush1.msra.mxu0 0.0
      %1602 = vmatprep.subr.mxu0 0.0
      %1603 = vmatpush1.msra.mxu0 0.0
      %1604 = vmatprep.subr.mxu0 0.0
      %1605 = vmatpush1.msra.mxu0 0.0
      %1606 = vmatprep.subr.mxu0 0.0
      %1607 = vmatpush1.msra.mxu0 0.0
      %1608 = vmatprep.subr.mxu0 0.0
      %1609 = vmatpush1.msra.mxu0 0.0
      %1610 = vmatprep.subr.mxu0 0.0
      %1611 = vmatpush1.msra.mxu0 0.0
      %1612 = vmatprep.subr.mxu0 0.0
      %1613 = vmatpush1.msra.mxu0 0.0
      %1614 = vmatprep.subr.mxu0 0.0
      %1615 = vmatpush1.msra.mxu0 0.0
      %1616 = vmatprep.subr.mxu0 0.0
      %1617 = vmatpush1.msra.mxu0 0.0
      %1618 = vmatprep.subr.mxu0 0.0
      %1619 = vmatpush1.msra.mxu0 0.0
      %1620 = vmatprep.subr.mxu0 0.0
      %1621 = vmatpush1.msra.mxu0 0.0
      %1622 = vmatprep.subr.mxu0 0.0
      %1623 = vmatpush1.msra.mxu0 0.0
      %1624 = vmatprep.subr.mxu0 0.0
      %1625 = vmatpush1.msra.mxu0 0.0
      %1626 = vmatprep.subr.mxu0 0.0
      %1627 = vmatpush1.msra.mxu0 0.0
      %1628 = vmatprep.subr.mxu0 0.0
      %1629 = vmatpush1.msra.mxu0 0.0
      %1630 = vmatprep.subr.mxu0 0.0
      %1631 = vmatpush1.msra.mxu0 0.0
      %1632 = vmatprep.subr.mxu0 0.0
      %1633 = vmatpush1.msra.mxu0 0.0
      %1634 = vmatprep.subr.mxu0 0.0
      %1635 = vmatpush1.msra.mxu0 0.0
      %1636 = vmatprep.subr.mxu0 0.0
      %1637 = vmatpush1.msra.mxu0 0.0
      %1638 = vmatprep.subr.mxu0 0.0
      %1639 = vmatpush1.msra.mxu0 0.0
      %1640 = vmatprep.subr.mxu0 0.0
      %1641 = vmatpush1.msra.mxu0 0.0
      %1642 = vmatprep.subr.mxu0 0.0
      %1643 = vmatpush1.msra.mxu0 0.0
      %1644 = vmatprep.mubr.f32.mxu0 0.0
      %1645 = vmatmul.mubr.f32.gmra.mrb[0].mxu0 %v1226
      %v1646 = vpop.f32.mrb[0].mxu0
      %v1647 = vadd.f32 %v199, %v1646
      %v1648 = vpop.f32.mrb[0].mxu0
      %1649 = vdwg.mxu0
      %v1650 = vadd.f32 %v1577, %v1647
      %v1651 = vxor.u32 %v1650, 2147483648
      %v1652 = vmul.f32 %v1651, 1.442695
      %v1653 = vpow.pop %v1652
      %v1654 = vadd.f32 %v1653, 1.0
      %v1655 = vrcp.pop %v1654
      %v1656 = vmul.f32 1.0, %v1655
      %1658 = vrot.lane.b32.xlu0 %v1647, 64
      %v1659 = vpop.permute.xlu0 %1658
      %v1661 = vmul.f32 %v1656, %v1659
      %1663 = vrot.lane.b32.xlu0 %v1661, 64
      %v1664 = vpop.permute.xlu0 %1663
      %v1666 = vadd.f32 %v1577, %v1664
      %v1667 = vtanh.pop %v1666
      %v1668 = vsub.f32 1.0, %v1656
      %1670 = vrot.lane.b32.xlu0 %v1667, 96
      %v1671 = vpop.permute.xlu0 %1670
      %v1673 = vmul.f32 %v1668, %v1671
      %v1674 = vmul.f32 %v1656, %v1222
      %v1675 = vadd.f32 %v1673, %v1674
      %1677 = vrot.lane.b32.xlu0 %v1675, 96
      %v1678 = vpop.permute.xlu0 %1677
      %v1679 = vsel %vm204, %v1678, 0
      %1681 = vmatprep.subr.mxu0 0.0
      %1682 = vmatpush1.msra.mxu0 %v86
      %1683 = vmatprep.subr.mxu0 0.0
      %1684 = vmatpush1.msra.mxu0 %v87
      %1685 = vmatprep.subr.mxu0 0.0
      %1686 = vmatpush1.msra.mxu0 %v88
      %1687 = vmatprep.subr.mxu0 0.0
      %1688 = vmatpush1.msra.mxu0 %v89
      %1689 = vmatprep.subr.mxu0 0.0
      %1690 = vmatpush1.msra.mxu0 0.0
      %1691 = vmatprep.subr.mxu0 0.0
      %1692 = vmatpush1.msra.mxu0 0.0
      %1693 = vmatprep.subr.mxu0 0.0
      %1694 = vmatpush1.msra.mxu0 0.0
      %1695 = vmatprep.subr.mxu0 0.0
      %1696 = vmatpush1.msra.mxu0 0.0
      %1697 = vmatprep.subr.mxu0 0.0
      %1698 = vmatpush1.msra.mxu0 0.0
      %1699 = vmatprep.subr.mxu0 0.0
      %1700 = vmatpush1.msra.mxu0 0.0
      %1701 = vmatprep.subr.mxu0 0.0
      %1702 = vmatpush1.msra.mxu0 0.0
      %1703 = vmatprep.subr.mxu0 0.0
      %1704 = vmatpush1.msra.mxu0 0.0
      %1705 = vmatprep.subr.mxu0 0.0
      %1706 = vmatpush1.msra.mxu0 0.0
      %1707 = vmatprep.subr.mxu0 0.0
      %1708 = vmatpush1.msra.mxu0 0.0
      %1709 = vmatprep.subr.mxu0 0.0
      %1710 = vmatpush1.msra.mxu0 0.0
      %1711 = vmatprep.subr.mxu0 0.0
      %1712 = vmatpush1.msra.mxu0 0.0
      %1713 = vmatprep.subr.mxu0 0.0
      %1714 = vmatpush1.msra.mxu0 0.0
      %1715 = vmatprep.subr.mxu0 0.0
      %1716 = vmatpush1.msra.mxu0 0.0
      %1717 = vmatprep.subr.mxu0 0.0
      %1718 = vmatpush1.msra.mxu0 0.0
      %1719 = vmatprep.subr.mxu0 0.0
      %1720 = vmatpush1.msra.mxu0 0.0
      %1721 = vmatprep.subr.mxu0 0.0
      %1722 = vmatpush1.msra.mxu0 0.0
      %1723 = vmatprep.subr.mxu0 0.0
      %1724 = vmatpush1.msra.mxu0 0.0
      %1725 = vmatprep.subr.mxu0 0.0
      %1726 = vmatpush1.msra.mxu0 0.0
      %1727 = vmatprep.subr.mxu0 0.0
      %1728 = vmatpush1.msra.mxu0 0.0
      %1729 = vmatprep.subr.mxu0 0.0
      %1730 = vmatpush1.msra.mxu0 0.0
      %1731 = vmatprep.subr.mxu0 0.0
      %1732 = vmatpush1.msra.mxu0 0.0
      %1733 = vmatprep.subr.mxu0 0.0
      %1734 = vmatpush1.msra.mxu0 0.0
      %1735 = vmatprep.subr.mxu0 0.0
      %1736 = vmatpush1.msra.mxu0 0.0
      %1737 = vmatprep.subr.mxu0 0.0
      %1738 = vmatpush1.msra.mxu0 0.0
      %1739 = vmatprep.subr.mxu0 0.0
      %1740 = vmatpush1.msra.mxu0 0.0
      %1741 = vmatprep.subr.mxu0 0.0
      %1742 = vmatpush1.msra.mxu0 0.0
      %1743 = vmatprep.subr.mxu0 0.0
      %1744 = vmatpush1.msra.mxu0 0.0
      %1745 = vmatprep.mubr.f32.mxu0 0.0
      %1746 = vmatmul.mubr.f32.gmra.mrb[0].mxu0 %v1679
      %v1747 = vpop.f32.mrb[0].mxu0
      %v1748 = vadd.f32 %v307, %v1747
      %v1749 = vpop.f32.mrb[0].mxu0
      %1750 = vdwg.mxu0
      %1751 = vmatprep.subr.mxu0 0.0
      %1752 = vmatpush1.msra.mxu0 %v90
      %1753 = vmatprep.subr.mxu0 0.0
      %1754 = vmatpush1.msra.mxu0 %v91
      %1755 = vmatprep.subr.mxu0 0.0
      %1756 = vmatpush1.msra.mxu0 %v92
      %1757 = vmatprep.subr.mxu0 0.0
      %1758 = vmatpush1.msra.mxu0 %v93
      %1759 = vmatprep.subr.mxu0 0.0
      %1760 = vmatpush1.msra.mxu0 0.0
      %1761 = vmatprep.subr.mxu0 0.0
      %1762 = vmatpush1.msra.mxu0 0.0
      %1763 = vmatprep.subr.mxu0 0.0
      %1764 = vmatpush1.msra.mxu0 0.0
      %1765 = vmatprep.subr.mxu0 0.0
      %1766 = vmatpush1.msra.mxu0 0.0
      %1767 = vmatprep.subr.mxu0 0.0
      %1768 = vmatpush1.msra.mxu0 0.0
      %1769 = vmatprep.subr.mxu0 0.0
      %1770 = vmatpush1.msra.mxu0 0.0
      %1771 = vmatprep.subr.mxu0 0.0
      %1772 = vmatpush1.msra.mxu0 0.0
      %1773 = vmatprep.subr.mxu0 0.0
      %1774 = vmatpush1.msra.mxu0 0.0
      %1775 = vmatprep.subr.mxu0 0.0
      %1776 = vmatpush1.msra.mxu0 0.0
      %1777 = vmatprep.subr.mxu0 0.0
      %1778 = vmatpush1.msra.mxu0 0.0
      %1779 = vmatprep.subr.mxu0 0.0
      %1780 = vmatpush1.msra.mxu0 0.0
      %1781 = vmatprep.subr.mxu0 0.0
      %1782 = vmatpush1.msra.mxu0 0.0
      %1783 = vmatprep.subr.mxu0 0.0
      %1784 = vmatpush1.msra.mxu0 0.0
      %1785 = vmatprep.subr.mxu0 0.0
      %1786 = vmatpush1.msra.mxu0 0.0
      %1787 = vmatprep.subr.mxu0 0.0
      %1788 = vmatpush1.msra.mxu0 0.0
      %1789 = vmatprep.subr.mxu0 0.0
      %1790 = vmatpush1.msra.mxu0 0.0
      %1791 = vmatprep.subr.mxu0 0.0
      %1792 = vmatpush1.msra.mxu0 0.0
      %1793 = vmatprep.subr.mxu0 0.0
      %1794 = vmatpush1.msra.mxu0 0.0
      %1795 = vmatprep.subr.mxu0 0.0
      %1796 = vmatpush1.msra.mxu0 0.0
      %1797 = vmatprep.subr.mxu0 0.0
      %1798 = vmatpush1.msra.mxu0 0.0
      %1799 = vmatprep.subr.mxu0 0.0
      %1800 = vmatpush1.msra.mxu0 0.0
      %1801 = vmatprep.subr.mxu0 0.0
      %1802 = vmatpush1.msra.mxu0 0.0
      %1803 = vmatprep.subr.mxu0 0.0
      %1804 = vmatpush1.msra.mxu0 0.0
      %1805 = vmatprep.subr.mxu0 0.0
      %1806 = vmatpush1.msra.mxu0 0.0
      %1807 = vmatprep.subr.mxu0 0.0
      %1808 = vmatpush1.msra.mxu0 0.0
      %1809 = vmatprep.subr.mxu0 0.0
      %1810 = vmatpush1.msra.mxu0 0.0
      %1811 = vmatprep.subr.mxu0 0.0
      %1812 = vmatpush1.msra.mxu0 0.0
      %1813 = vmatprep.subr.mxu0 0.0
      %1814 = vmatpush1.msra.mxu0 0.0
      %1815 = vmatprep.mubr.f32.mxu0 0.0
      %1816 = vmatmul.mubr.f32.gmra.mrb[0].mxu0 %v1397
      %v1817 = vpop.f32.mrb[0].mxu0
      %v1818 = vadd.f32 %v388, %v1817
      %v1819 = vpop.f32.mrb[0].mxu0
      %1820 = vdwg.mxu0
      %v1821 = vadd.f32 %v1748, %v1818
      %v1822 = vxor.u32 %v1821, 2147483648
      %v1823 = vmul.f32 %v1822, 1.442695
      %v1824 = vpow.pop %v1823
      %v1825 = vadd.f32 %v1824, 1.0
      %v1826 = vrcp.pop %v1825
      %v1827 = vmul.f32 1.0, %v1826
      %1829 = vrot.lane.b32.xlu0 %v1818, 64
      %v1830 = vpop.permute.xlu0 %1829
      %v1832 = vmul.f32 %v1827, %v1830
      %1834 = vrot.lane.b32.xlu0 %v1832, 64
      %v1835 = vpop.permute.xlu0 %1834
      %v1837 = vadd.f32 %v1748, %v1835
      %v1838 = vtanh.pop %v1837
      %v1839 = vsub.f32 1.0, %v1827
      %1841 = vrot.lane.b32.xlu0 %v1838, 96
      %v1842 = vpop.permute.xlu0 %1841
      %v1844 = vmul.f32 %v1839, %v1842
      %v1845 = vmul.f32 %v1827, %v1393
      %v1846 = vadd.f32 %v1844, %v1845
      %1848 = vrot.lane.b32.xlu0 %v1846, 96
      %v1849 = vpop.permute.xlu0 %1848
      %v1850 = vsel %vm204, %v1849, 0
      %1852 = vmatprep.subr.mxu0 0.0
      %1853 = vmatpush1.msra.mxu0 %v96
      %1854 = vmatprep.subr.mxu0 0.0
      %1855 = vmatpush1.msra.mxu0 %v97
      %1856 = vmatprep.subr.mxu0 0.0
      %1857 = vmatpush1.msra.mxu0 %v98
      %1858 = vmatprep.subr.mxu0 0.0
      %1859 = vmatpush1.msra.mxu0 %v99
      %1860 = vmatprep.subr.mxu0 0.0
      %1861 = vmatpush1.msra.mxu0 0.0
      %1862 = vmatprep.subr.mxu0 0.0
      %1863 = vmatpush1.msra.mxu0 0.0
      %1864 = vmatprep.subr.mxu0 0.0
      %1865 = vmatpush1.msra.mxu0 0.0
      %1866 = vmatprep.subr.mxu0 0.0
      %1867 = vmatpush1.msra.mxu0 0.0
      %1868 = vmatprep.subr.mxu0 0.0
      %1869 = vmatpush1.msra.mxu0 0.0
      %1870 = vmatprep.subr.mxu0 0.0
      %1871 = vmatpush1.msra.mxu0 0.0
      %1872 = vmatprep.subr.mxu0 0.0
      %1873 = vmatpush1.msra.mxu0 0.0
      %1874 = vmatprep.subr.mxu0 0.0
      %1875 = vmatpush1.msra.mxu0 0.0
      %1876 = vmatprep.subr.mxu0 0.0
      %1877 = vmatpush1.msra.mxu0 0.0
      %1878 = vmatprep.subr.mxu0 0.0
      %1879 = vmatpush1.msra.mxu0 0.0
      %1880 = vmatprep.subr.mxu0 0.0
      %1881 = vmatpush1.msra.mxu0 0.0
      %1882 = vmatprep.subr.mxu0 0.0
      %1883 = vmatpush1.msra.mxu0 0.0
      %1884 = vmatprep.subr.mxu0 0.0
      %1885 = vmatpush1.msra.mxu0 0.0
      %1886 = vmatprep.subr.mxu0 0.0
      %1887 = vmatpush1.msra.mxu0 0.0
      %1888 = vmatprep.subr.mxu0 0.0
      %1889 = vmatpush1.msra.mxu0 0.0
      %1890 = vmatprep.subr.mxu0 0.0
      %1891 = vmatpush1.msra.mxu0 0.0
      %1892 = vmatprep.subr.mxu0 0.0
      %1893 = vmatpush1.msra.mxu0 0.0
      %1894 = vmatprep.subr.mxu0 0.0
      %1895 = vmatpush1.msra.mxu0 0.0
      %1896 = vmatprep.subr.mxu0 0.0
      %1897 = vmatpush1.msra.mxu0 0.0
      %1898 = vmatprep.subr.mxu0 0.0
      %1899 = vmatpush1.msra.mxu0 0.0
      %1900 = vmatprep.subr.mxu0 0.0
      %1901 = vmatpush1.msra.mxu0 0.0
      %1902 = vmatprep.subr.mxu0 0.0
      %1903 = vmatpush1.msra.mxu0 0.0
      %1904 = vmatprep.subr.mxu0 0.0
      %1905 = vmatpush1.msra.mxu0 0.0
      %1906 = vmatprep.subr.mxu0 0.0
      %1907 = vmatpush1.msra.mxu0 0.0
      %1908 = vmatprep.subr.mxu0 0.0
      %1909 = vmatpush1.msra.mxu0 0.0
      %1910 = vmatprep.subr.mxu0 0.0
      %1911 = vmatpush1.msra.mxu0 0.0
      %1912 = vmatprep.subr.mxu0 0.0
      %1913 = vmatpush1.msra.mxu0 0.0
      %1914 = vmatprep.subr.mxu0 0.0
      %1915 = vmatpush1.msra.mxu0 0.0
      %1916 = vmatprep.mubr.f32.mxu0 0.0
      %1917 = vmatmul.mubr.f32.gmra.mrb[0].mxu0 %v1850
      %v1918 = vpop.f32.mrb[0].mxu0
      %v1919 = vadd.f32 %v495, %v1918
      %v1920 = vpop.f32.mrb[0].mxu0
      %1921 = vdwg.mxu0
      %v1922 = vxor.u32 %v1919, 2147483648
      %v1923 = vmul.f32 %v1922, 1.442695
      %v1924 = vpow.pop %v1923
      %v1925 = vadd.f32 %v1924, 1.0
      %v1926 = vrcp.pop %v1925
      %v1927 = vmul.f32 1.0, %v1926
      %v1928 = vsel %vm578, %v1919, -inf
      %1929 = vmax.xlane.f32.xlu0 %v1928
      %v1930 = vpop.xlane.xlu0 %1929
      %v1931 = vsub.f32 %v1919, %v1930
      %v1932 = vmul.f32 %v1931, 1.442695
      %v1933 = vpow.pop %v1932
      %v1934 = vsel %vm578, %v1933, 0.0
      %1935 = vadd.xlane.f32.xlu0 %v1934
      %v1936 = vpop.xlane.xlu0 %1935
      %v1937 = vrcp.pop %v1936
      %v1938 = vmul.f32 %v1933, %v1937
      %v1939 = vmul.f32 %v1938, %v1493
      %v1940 = vmul.f32 %v1488, %v1500
      %v1941 = vadd.f32 %v1939, %v1940
      %v1942 = vmul.f32 %v1489, %v1927
      %1944 = vset.pattern.permute.xlu0 5
      %1945 = vperm.xlu0 %1944, %v1942
      %v1946 = vpop.permute.xlu0 %1945
      %v1948 = vmul.f32 %v1675, %v1946
      %v1949 = vsub.f32 1.0, %v1942
      %1951 = vset.pattern.permute.xlu0 5
      %1952 = vperm.xlu0 %1951, %v1949
      %v1953 = vpop.permute.xlu0 %1952
      %v1955 = vmul.f32 %v1503, %v1953
      %v1956 = vadd.f32 %v1948, %v1955
      %v1957 = vmul.f32 %v1846, %v1946
      %v1958 = vmul.f32 %v1506, %v1953
      %v1959 = vadd.f32 %v1957, %v1958
      %v1960 = vsel %vm578, %v1941, %v1942
      %s1961 = smul.u32 %s102, 8
      %s1962 = scalar_lea.vmem %s11, %s1961
      %vm1963 = vcmask 48128
      %1964 = vst.msk [vmem:[%s1962] sm:$0xff] %vm1963, %v1960
    $region62: #{tpu_custom_call.1} parent=1 // loop_footer
      %s106 = sadd.s32 1, %s102
    $region63: #{tpu_custom_call.1} parent=1 // loop_footer_branch
      %101 = sbr.rel target = $region59
    $region64: #{tpu_custom_call.1} parent=1 // loop_exit
      _
    // Predicated region
    $region65: #{tpu_custom_call.1} parent=1 // pred_check
      _
    $region66: #{tpu_custom_call.1} parent=1 // pred_check_branch
      %1966 = sbr.rel (0) target = $region68
    $region67: #{tpu_custom_call.1} parent=1 // pred_region
      _
    $region68: #{tpu_custom_call.1} parent=1 // pred_fallthru
      _
    // Predicated region
    $region69: #{tpu_custom_call.1} parent=1 // pred_check
      _
    $region70: #{tpu_custom_call.1} parent=1 // pred_check_branch
      %1968 = sbr.rel (0) target = $region72
    $region71: #{tpu_custom_call.1} parent=1 // pred_region
      _
    $region72: #{tpu_custom_call.1} parent=1 // pred_fallthru
      _
    %1969 = vsyncpa [#allocation3], 1
    %1970 = vsyncpa [#allocation5], 1

</llo_original>
